<compile_context>
chip_gen: v7x
topology: tpu7x:2x2x1
jax: 0.10.0
libtpu: 0.0.40
codegen_flags: <defaults>
</compile_context>

<pallas_src>
import math
import functools

import numpy as np
import jax
import jax.numpy as jnp
from jax.experimental import pallas as pl
from jax.experimental.pallas import tpu as pltpu


def _cdiv(a, b):
    return (a + b - 1) // b


def _quad_loss_kernel(temp_ref, w_ref, lab_ref, labnz_ref, pref_ref,      # inputs
                      logits_ref, loss_ref,                               # outputs
                      m_run, l_run, sl_run, arg_run, lab_logit,           # VMEM scratch
                      *, gama, exp_mg, mc_num, n_v, tile_v, v_true, v_pad):
    # grid = (token_tiles, vocab_tiles); vocab is the innermost (reduction) axis.
    v = pl.program_id(1)

    # ----- init per-(token, MC) online-softmax state on the first vocab tile -----
    @pl.when(v == 0)
    def _():
        m_run[...] = jnp.full_like(m_run, -1e30)
        l_run[...] = jnp.zeros_like(l_run)
        sl_run[...] = jnp.zeros_like(sl_run)
        arg_run[...] = jnp.zeros_like(arg_run)
        lab_logit[...] = jnp.zeros_like(lab_logit)

    w = w_ref[...]                              # (D, TV) bf16 — shared by all MC samples
    labels = lab_ref[...]                       # (TM, 1) int32
    tm = lab_ref.shape[0]
    col = jax.lax.broadcasted_iota(jnp.int32, (tm, tile_v), 1) + v * tile_v
    lab_hit = (col == labels).astype(jnp.float32)       # gold-label column mask (hoisted)

    # ----- one MXU matmul per MC sample against the SAME streamed weight tile -----
    for i in range(mc_num):                     # static unroll; mc_num is small
        logits = jnp.dot(temp_ref[i], w, preferred_element_type=jnp.float32)  # (TM,TV) f32
        logits_ref[i] = logits.astype(logits_ref.dtype)                       # bf16 writeback
        if v_pad != v_true:                                                   # static: padded vocab
            logits = jnp.where(col < v_true, logits, -1e30)

        # online softmax statistics over the vocab axis
        tile_max = jnp.max(logits, axis=-1, keepdims=True)                    # (TM,1)
        tile_arg = jnp.min(jnp.where(logits == tile_max, col, jnp.int32(2 ** 30)),
                           axis=-1, keepdims=True)                            # (TM,1)
        m_prev = m_run[:, i:i + 1]
        m_new = jnp.maximum(m_prev, tile_max)
        a = jnp.exp(m_prev - m_new)
        ex = jnp.exp(logits - m_new)
        l_run[:, i:i + 1] = a * l_run[:, i:i + 1] + jnp.sum(ex, axis=-1, keepdims=True)
        sl_run[:, i:i + 1] = (a * sl_run[:, i:i + 1]
                              + jnp.sum(ex * logits, axis=-1, keepdims=True))
        arg_run[:, i:i + 1] = jnp.where(tile_max > m_prev, tile_arg, arg_run[:, i:i + 1])
        lab_logit[:, i:i + 1] = (lab_logit[:, i:i + 1]
                                 + jnp.sum(logits * lab_hit, axis=-1, keepdims=True))
        m_run[:, i:i + 1] = m_new

    # ----- finalize the per-token Quad loss on the last vocab tile -----
    @pl.when(v == n_v - 1)
    def _():
        labnz = labnz_ref[...]                  # (TM,1) 1.0 where label != 0
        pref = pref_ref[...]                    # (TM,1) 1.0 where pos < per-row label length
        n_sum = jnp.zeros_like(labnz)
        p_sum = jnp.zeros_like(labnz)
        nll_sum = jnp.zeros_like(labnz)
        mi_sum = jnp.zeros_like(labnz)
        for i in range(mc_num):
            mx = m_run[:, i:i + 1]
            denom = l_run[:, i:i + 1]
            inv_denom = 1.0 / denom
            log_denom = jnp.log(denom)
            sm_max = inv_denom                                   # softmax at the argmax = 1/denom
            sm_lab = jnp.exp(lab_logit[:, i:i + 1] - mx) * inv_denom   # softmax at gold label
            logsm_lab = lab_logit[:, i:i + 1] - mx - log_denom         # log-softmax at gold label
            mi_tok = sl_run[:, i:i + 1] * inv_denom - mx - log_denom   # sum_v sm * log_sm
            neg_ok = (arg_run[:, i:i + 1] != labels).astype(jnp.float32)
            n_sum = n_sum + jnp.exp(gama * sm_max) * neg_ok * pref
            p_sum = p_sum + jnp.exp(-gama * sm_lab)
            nll_sum = nll_sum - logsm_lab * labnz                # NLL with ignore_index = 0
            mi_sum = mi_sum + mi_tok * labnz
        mul_tok = jnp.log(1.0 + exp_mg * n_sum * p_sum) * labnz
        loss_ref[...] = mul_tok + nll_sum * (1.0 / mc_num) - mi_sum


def mc_lm_head_and_loss(temp_all, lm_head_w, labels, lab_nz, in_prefix, *,
                        gama, m, mc_num,
                        block_m=256, block_v=512,
                        logits_dtype=jnp.bfloat16,
                        vmem_limit_bytes=64 * 1024 * 1024):
    """Fused MC-dropout lm_head matmul + Quad (mul / NLL / MI) losses.

    temp_all  : (MC, M, D) MC-dropout'ed decoder hiddens (tie rescale + dropout folded in)
    lm_head_w : (D, V) tied lm_head weight (cast to bf16 here for the MXU)
    labels    : (M,)   int32
    lab_nz    : (M,)   f32, 1.0 where label != 0
    in_prefix : (M,)   f32, 1.0 where seq position < per-row label length
    Returns (all_logits (MC, M, V) in logits_dtype, scalar loss f32).
    """
    MC, M, D = temp_all.shape
    assert MC == mc_num
    V = lm_head_w.shape[1]

    tm = min(block_m, _cdiv(M, 8) * 8)          # token tile (multiple of 8 sublanes)
    m_pad = _cdiv(M, tm) * tm
    tv = min(block_v, _cdiv(V, 128) * 128)      # vocab tile (multiple of 128 lanes)
    v_pad = _cdiv(V, tv) * tv
    n_t, n_v = m_pad // tm, v_pad // tv

    f32 = jnp.float32
    temp_all = jnp.pad(temp_all.astype(jnp.bfloat16), ((0, 0), (0, m_pad - M), (0, 0)))
    w = jnp.pad(lm_head_w.astype(jnp.bfloat16), ((0, 0), (0, v_pad - V)))
    labels2 = jnp.pad(labels.astype(jnp.int32), (0, m_pad - M)).reshape(m_pad, 1)
    lab_nz2 = jnp.pad(lab_nz.astype(f32), (0, m_pad - M)).reshape(m_pad, 1)
    pref2 = jnp.pad(in_prefix.astype(f32), (0, m_pad - M)).reshape(m_pad, 1)

    kernel = functools.partial(
        _quad_loss_kernel,
        gama=float(gama), exp_mg=float(math.exp(m * gama)),
        mc_num=mc_num, n_v=n_v, tile_v=tv, v_true=V, v_pad=v_pad)

    grid_spec = pltpu.PrefetchScalarGridSpec(
        num_scalar_prefetch=0,
        grid=(n_t, n_v),
        in_specs=[
            # all MC operands of this token tile — resident in VMEM across the vocab sweep
            pl.BlockSpec((mc_num, tm, D), lambda t, v: (0, t, 0)),
            # lm_head weight columns — streamed once per (t, v), reused by all MC samples
            pl.BlockSpec((D, tv), lambda t, v: (0, v)),
            pl.BlockSpec((tm, 1), lambda t, v: (t, 0)),      # labels
            pl.BlockSpec((tm, 1), lambda t, v: (t, 0)),      # label != 0 mask
            pl.BlockSpec((tm, 1), lambda t, v: (t, 0)),      # prefix mask
        ],
        out_specs=[
            pl.BlockSpec((mc_num, tm, tv), lambda t, v: (0, t, v)),  # all_logits (bf16)
            pl.BlockSpec((tm, 1), lambda t, v: (t, 0)),              # per-token loss
        ],
        scratch_shapes=[
            pltpu.VMEM((tm, mc_num), f32),       # running max            (per MC sample)
            pltpu.VMEM((tm, mc_num), f32),       # running sum exp
            pltpu.VMEM((tm, mc_num), f32),       # running sum exp*logit  (MI term)
            pltpu.VMEM((tm, mc_num), jnp.int32), # running argmax index
            pltpu.VMEM((tm, mc_num), f32),       # logit at the gold label
        ],
    )

    all_logits, loss_tok = pl.pallas_call(
        kernel,
        out_shape=(jax.ShapeDtypeStruct((mc_num, m_pad, v_pad), logits_dtype),
                   jax.ShapeDtypeStruct((m_pad, 1), jnp.float32)),
        grid_spec=grid_spec,
        compiler_params=pltpu.CompilerParams(
            dimension_semantics=("parallel", "arbitrary"),
            vmem_limit_bytes=vmem_limit_bytes),
    )(temp_all, w, labels2, lab_nz2, pref2)

    return all_logits[:, :M, :V], jnp.sum(loss_tok)


def quad_t5_forward(labels, embed_table, *, mc_num, dropout_p, gama, m,
                    drop_masks=None, rng_key=None,
                    tie_word_embeddings=True, block_m=256, block_v=512):
    """Mirrors Quad_t5_model.forward (labels-only path)."""
    B, S = labels.shape
    V, D = embed_table.shape

    # T5._shift_right(labels): prepend decoder_start_token_id (= pad = 0), drop last.
    decoder_input_ids = jnp.concatenate(
        [jnp.zeros((B, 1), dtype=labels.dtype), labels[:, :-1]], axis=1)
    dec_embeds = jnp.take(embed_table, decoder_input_ids, axis=0)   # (B, S, D)

    # TODO(synk): the pretrained T5 encoder + decoder transformer stack
    # (T5ForConditionalGeneration.from_pretrained) has no in-script equivalent; the
    # decoder input embeddings stand in for decoder_outputs[0] (last_layer_hiddens).
    # Everything Quad-specific downstream (MC-dropout lm_head, negative-sample
    # masks, mul/NLL/MI losses) is computed exactly, inside the Pallas kernel.
    last_layer_hiddens = dec_embeds.astype(jnp.float32)

    tie_scale = D ** (-0.5) if tie_word_embeddings else 1.0
    hidden = (last_layer_hiddens * tie_scale).reshape(B * S, D)     # fold rescale once

    # MC-dropout masks (inverted dropout) — generated with jax.random outside the
    # kernel (no in-kernel PRNG; portable to interpret mode).
    if drop_masks is None:
        if dropout_p > 0.0:
            if rng_key is None:
                rng_key = jax.random.PRNGKey(0)
            keep = 1.0 - dropout_p
            drop_masks = (jax.random.bernoulli(rng_key, keep, (mc_num, B, S, D))
                          .astype(jnp.float32) / keep)
        else:
            drop_masks = jnp.ones((mc_num, B, S, D), dtype=jnp.float32)
    temp_all = (hidden[None] * drop_masks.reshape(mc_num, B * S, D)).astype(jnp.bfloat16)

    lm_head_w = embed_table.T                                        # tied lm_head, (D, V)

    labels_flat = labels.reshape(B * S).astype(jnp.int32)
    lab_nz = (labels != 0).astype(jnp.float32).reshape(B * S)
    lengths = jnp.sum((labels != 0).astype(jnp.int32), axis=-1)
    in_prefix = (jnp.arange(S)[None, :] < lengths[:, None]).astype(jnp.float32)
    in_prefix = in_prefix.reshape(B * S)

    all_logits, loss = mc_lm_head_and_loss(
        temp_all, lm_head_w, labels_flat, lab_nz, in_prefix,
        gama=gama, m=m, mc_num=mc_num, block_m=block_m, block_v=block_v)
    return loss, all_logits.reshape(mc_num, B, S, V)


def _reference(hidden_scaled, drop_masks, w, labels, gama, m):
    """Pure-JAX reference of the Quad loss path (mirrors the torch code).

    hidden_scaled already includes the tie_word_embeddings rescale; drop_masks are
    explicit inverted-dropout masks.  Uses the same bf16 matmul-operand casts as
    the kernel.
    """
    B, S = labels.shape
    V = w.shape[1]
    temp = (hidden_scaled[None] * drop_masks).astype(jnp.bfloat16)
    logits = jnp.einsum('mbsd,dv->mbsv', temp, w.astype(jnp.bfloat16),
                        preferred_element_type=jnp.float32)
    sm = jax.nn.softmax(logits, axis=-1)
    logsm = jax.nn.log_softmax(logits, axis=-1)
    arg = jnp.argmax(logits, axis=-1)                                  # MAX()
    lengths = jnp.sum(labels != 0, axis=-1)
    in_prefix = jnp.arange(S)[None, :] < lengths[:, None]
    onehot_max = jax.nn.one_hot(arg, V, dtype=jnp.float32)
    onehot_lab = jax.nn.one_hot(labels, V, dtype=jnp.float32)
    nmask = (onehot_max * in_prefix[None, :, :, None].astype(jnp.float32)
             * (1.0 - onehot_lab[None]))
    lab_nz = (labels != 0).astype(jnp.float32)
    n_l = jnp.sum(jnp.exp(gama * sm) * nmask, axis=(0, -1))
    p_l = jnp.sum(jnp.sum(jnp.exp(-gama * sm) * onehot_lab[None], axis=-1), axis=0)
    mul_loss = jnp.sum(jnp.log(1.0 + math.exp(m * gama) * n_l * p_l) * lab_nz)
    logsm_at_lab = jnp.sum(logsm * onehot_lab[None], axis=-1)
    mse_loss = jnp.mean(jnp.sum(-logsm_at_lab * lab_nz[None], axis=(1, 2)))
    mi_loss = -jnp.sum(sm * logsm * lab_nz[None, :, :, None])
    return mul_loss + mse_loss + mi_loss, logits


if __name__ == "__main__":
    # Small shapes; block_m=8 / block_v=128 force multi-tile token and vocab grid
    # axes (and vocab padding 250 -> 256) so all kernel paths are exercised.
    B, S, D, V, MC = 2, 7, 32, 250, 3
    gama, m = 1.0, 0.3

    key = jax.random.PRNGKey(0)
    k_emb, k_lab, k_len, k_drop = jax.random.split(key, 4)

    embed_table = jax.random.normal(k_emb, (V, D), dtype=jnp.float32)
    lengths = jax.random.randint(k_len, (B,), 3, S + 1)
    raw_labels = jax.random.randint(k_lab, (B, S), 1, V)
    labels = jnp.where(jnp.arange(S)[None, :] < lengths[:, None],
                       raw_labels, 0).astype(jnp.int32)

    decoder_input_ids = jnp.concatenate(
        [jnp.zeros((B, 1), dtype=labels.dtype), labels[:, :-1]], axis=1)
    hidden_scaled = (jnp.take(embed_table, decoder_input_ids, axis=0)
                     .astype(jnp.float32) * (D ** (-0.5)))

    # --- deterministic path (dropout disabled) ---
    loss0, logits0 = quad_t5_forward(labels, embed_table,
                                     mc_num=MC, dropout_p=0.0, gama=gama, m=m,
                                     block_m=8, block_v=128)
    jax.block_until_ready((loss0, logits0))
    ones_masks = jnp.ones((MC, B, S, D), dtype=jnp.float32)
    ref_loss0, ref_logits0 = _reference(hidden_scaled, ones_masks, embed_table.T,
                                        labels, gama, m)
    np.testing.assert_allclose(np.asarray(jnp.asarray(logits0, jnp.float32)),
                               np.asarray(ref_logits0), rtol=2e-2, atol=2e-2)
    np.testing.assert_allclose(float(loss0), float(ref_loss0), rtol=2e-2, atol=1e-1)

    # --- MC-dropout path (host-precomputed inverted-dropout masks) ---
    p = 0.1
    keep = 1.0 - p
    drop_masks = (jax.random.bernoulli(k_drop, keep, (MC, B, S, D))
                  .astype(jnp.float32) / keep)
    loss1, logits1 = quad_t5_forward(labels, embed_table,
                                     mc_num=MC, dropout_p=p, gama=gama, m=m,
                                     drop_masks=drop_masks,
                                     block_m=8, block_v=128)
    jax.block_until_ready((loss1, logits1))
    ref_loss1, ref_logits1 = _reference(hidden_scaled, drop_masks, embed_table.T,
                                        labels, gama, m)
    assert logits1.shape == (MC, B, S, V)
    np.testing.assert_allclose(np.asarray(jnp.asarray(logits1, jnp.float32)),
                               np.asarray(ref_logits1), rtol=2e-2, atol=2e-2)
    np.testing.assert_allclose(float(loss1), float(ref_loss1), rtol=2e-2, atol=1e-1)
    assert np.isfinite(float(loss1))

    print("KERNEL_OK")
</pallas_src>

<mosaic_0001>
module attributes {stable_mosaic.version = 11 : i64} {
  func.func @_quad_loss_kernel(%arg0: i32, %arg1: i32, %arg2: memref<3x8x32xbf16, #tpu.memory_space<vmem>>, %arg3: memref<32x128xbf16, #tpu.memory_space<vmem>>, %arg4: memref<8x1xi32, #tpu.memory_space<vmem>>, %arg5: memref<8x1xf32, #tpu.memory_space<vmem>>, %arg6: memref<8x1xf32, #tpu.memory_space<vmem>>, %arg7: memref<3x8x128xbf16, #tpu.memory_space<vmem>>, %arg8: memref<8x1xf32, #tpu.memory_space<vmem>>, %arg9: memref<8x3xf32, #tpu.memory_space<vmem>>, %arg10: memref<8x3xf32, #tpu.memory_space<vmem>>, %arg11: memref<8x3xf32, #tpu.memory_space<vmem>>, %arg12: memref<8x3xi32, #tpu.memory_space<vmem>>, %arg13: memref<8x3xf32, #tpu.memory_space<vmem>>) attributes {dimension_semantics = [#tpu.dimension_semantics<parallel>, #tpu.dimension_semantics<arbitrary>], iteration_bounds = array<i64: 2, 2>, scalar_prefetch = 0 : i64, scratch_operands = 5 : i64, tpu.core_type = #tpu.core_type<tc>, window_params = [{transform_indices = @transform_0, window_bounds = array<i64: 3, 8, 32>}, {transform_indices = @transform_1, window_bounds = array<i64: 32, 128>}, {transform_indices = @transform_2, window_bounds = array<i64: 8, 1>}, {transform_indices = @transform_3, window_bounds = array<i64: 8, 1>}, {transform_indices = @transform_4, window_bounds = array<i64: 8, 1>}, {transform_indices = @transform_5, window_bounds = array<i64: 3, 8, 128>}, {transform_indices = @transform_6, window_bounds = array<i64: 8, 1>}]} {
    %c0_i32 = arith.constant 0 : i32
    %0 = arith.cmpi eq, %arg1, %c0_i32 : i32
    %1 = arith.extui %0 : i1 to i32
    %c0_i32_0 = arith.constant 0 : i32
    %2 = arith.cmpi ne, %1, %c0_i32_0 : i32
    scf.if %2 {
      %cst_105 = arith.constant -1.000000e+30 : f32
      %166 = vector.broadcast %cst_105 : f32 to vector<8x3xf32>
      %c0_106 = arith.constant 0 : index
      %c0_107 = arith.constant 0 : index
      %167 = vector.load %arg9[%c0_106, %c0_107] : memref<8x3xf32, #tpu.memory_space<vmem>>, vector<8x3xf32>
      tpu.vector_store %arg9[%c0_106, %c0_107], %166 {strides = array<i32>} : memref<8x3xf32, #tpu.memory_space<vmem>>, vector<8x3xf32>,
      %cst_108 = arith.constant 0.000000e+00 : f32
      %168 = vector.broadcast %cst_108 : f32 to vector<8x3xf32>
      %c0_109 = arith.constant 0 : index
      %c0_110 = arith.constant 0 : index
      %169 = vector.load %arg10[%c0_109, %c0_110] : memref<8x3xf32, #tpu.memory_space<vmem>>, vector<8x3xf32>
      tpu.vector_store %arg10[%c0_109, %c0_110], %168 {strides = array<i32>} : memref<8x3xf32, #tpu.memory_space<vmem>>, vector<8x3xf32>,
      %cst_111 = arith.constant 0.000000e+00 : f32
      %170 = vector.broadcast %cst_111 : f32 to vector<8x3xf32>
      %c0_112 = arith.constant 0 : index
      %c0_113 = arith.constant 0 : index
      %171 = vector.load %arg11[%c0_112, %c0_113] : memref<8x3xf32, #tpu.memory_space<vmem>>, vector<8x3xf32>
      tpu.vector_store %arg11[%c0_112, %c0_113], %170 {strides = array<i32>} : memref<8x3xf32, #tpu.memory_space<vmem>>, vector<8x3xf32>,
      %c0_i32_114 = arith.constant 0 : i32
      %172 = vector.broadcast %c0_i32_114 : i32 to vector<8x3xi32>
      %c0_115 = arith.constant 0 : index
      %c0_116 = arith.constant 0 : index
      %173 = vector.load %arg12[%c0_115, %c0_116] : memref<8x3xi32, #tpu.memory_space<vmem>>, vector<8x3xi32>
      tpu.vector_store %arg12[%c0_115, %c0_116], %172 {strides = array<i32>} : memref<8x3xi32, #tpu.memory_space<vmem>>, vector<8x3xi32>,
      %cst_117 = arith.constant 0.000000e+00 : f32
      %174 = vector.broadcast %cst_117 : f32 to vector<8x3xf32>
      %c0_118 = arith.constant 0 : index
      %c0_119 = arith.constant 0 : index
      %175 = vector.load %arg13[%c0_118, %c0_119] : memref<8x3xf32, #tpu.memory_space<vmem>>, vector<8x3xf32>
      tpu.vector_store %arg13[%c0_118, %c0_119], %174 {strides = array<i32>} : memref<8x3xf32, #tpu.memory_space<vmem>>, vector<8x3xf32>,
    } else {
    }
    %c0 = arith.constant 0 : index
    %c0_1 = arith.constant 0 : index
    %3 = vector.load %arg3[%c0, %c0_1] : memref<32x128xbf16, #tpu.memory_space<vmem>>, vector<32x128xbf16>
    %c0_2 = arith.constant 0 : index
    %c0_3 = arith.constant 0 : index
    %4 = vector.load %arg4[%c0_2, %c0_3] : memref<8x1xi32, #tpu.memory_space<vmem>>, vector<8x1xi32>
    %5 = tpu.iota {dimensions = array<i32: 1>} : vector<8x128xi32>
    %c128_i32 = arith.constant 128 : i32
    %6 = arith.muli %arg1, %c128_i32 : i32
    %7 = vector.broadcast %6 : i32 to vector<8x128xi32>
    %8 = arith.addi %5, %7 : vector<8x128xi32>
    %9 = vector.broadcast %4 : vector<8x1xi32> to vector<8x128xi32>
    %10 = arith.cmpi eq, %8, %9 : vector<8x128xi32>
    %11 = arith.extui %10 : vector<8x128xi1> to vector<8x128xi32>
    %12 = arith.sitofp %11 : vector<8x128xi32> to vector<8x128xf32>
    %c0_4 = arith.constant 0 : index
    %c0_5 = arith.constant 0 : index
    %c0_6 = arith.constant 0 : index
    %13 = vector.load %arg2[%c0_4, %c0_5, %c0_6] : memref<3x8x32xbf16, #tpu.memory_space<vmem>>, vector<1x8x32xbf16>
    %14 = vector.shape_cast %13 : vector<1x8x32xbf16> to vector<8x32xbf16>
    %cst = arith.constant dense<0.000000e+00> : vector<8x128xf32>
    %15 = tpu.matmul %14, %3, %cst {dimension_numbers = #tpu.dot_dimension_numbers<[1], [0], [0], [1], [0, 0, 1, 1], [], []>} : vector<8x32xbf16>, vector<32x128xbf16>, vector<8x128xf32> -> vector<8x128xf32>
    %16 = arith.truncf %15 : vector<8x128xf32> to vector<8x128xbf16>
    %c0_7 = arith.constant 0 : index
    %c0_8 = arith.constant 0 : index
    %c0_9 = arith.constant 0 : index
    %17 = vector.load %arg7[%c0_7, %c0_8, %c0_9] : memref<3x8x128xbf16, #tpu.memory_space<vmem>>, vector<1x8x128xbf16>
    %18 = vector.shape_cast %17 : vector<1x8x128xbf16> to vector<8x128xbf16>
    %19 = vector.shape_cast %16 : vector<8x128xbf16> to vector<1x8x128xbf16>
    tpu.vector_store %arg7[%c0_7, %c0_8, %c0_9], %19 {strides = array<i32>} : memref<3x8x128xbf16, #tpu.memory_space<vmem>>, vector<1x8x128xbf16>,
    %c250_i32 = arith.constant 250 : i32
    %20 = vector.broadcast %c250_i32 : i32 to vector<8x128xi32>
    %21 = arith.cmpi slt, %8, %20 : vector<8x128xi32>
    %cst_10 = arith.constant -1.000000e+30 : f32
    %22 = vector.broadcast %cst_10 : f32 to vector<8x128xf32>
    %23 = arith.select %21, %15, %22 : vector<8x128xi1>, vector<8x128xf32>
    %cst_11 = arith.constant dense<0xFF800000> : vector<8xf32>
    %24 = vector.multi_reduction <maximumf>, %23, %cst_11 [1] : vector<8x128xf32> to vector<8xf32>
    %25 = vector.shape_cast %24 : vector<8xf32> to vector<8x1xf32>
    %26 = vector.broadcast %25 : vector<8x1xf32> to vector<8x128xf32>
    %27 = arith.cmpf oeq, %23, %26 : vector<8x128xf32>
    %c1073741824_i32 = arith.constant 1073741824 : i32
    %28 = vector.broadcast %c1073741824_i32 : i32 to vector<8x128xi32>
    %29 = arith.select %27, %8, %28 : vector<8x128xi1>, vector<8x128xi32>
    %cst_12 = arith.constant dense<2147483647> : vector<8xi32>
    %30 = vector.multi_reduction <minsi>, %29, %cst_12 [1] : vector<8x128xi32> to vector<8xi32>
    %31 = vector.shape_cast %30 : vector<8xi32> to vector<8x1xi32>
    %c0_13 = arith.constant 0 : index
    %c0_14 = arith.constant 0 : index
    %32 = vector.load %arg9[%c0_13, %c0_14] : memref<8x3xf32, #tpu.memory_space<vmem>>, vector<8x1xf32>
    %33 = arith.maximumf %32, %25 : vector<8x1xf32>
    %34 = arith.subf %32, %33 : vector<8x1xf32>
    %35 = math.exp %34 : vector<8x1xf32>
    %36 = vector.broadcast %33 : vector<8x1xf32> to vector<8x128xf32>
    %37 = arith.subf %23, %36 : vector<8x128xf32>
    %38 = math.exp %37 : vector<8x128xf32>
    %c0_15 = arith.constant 0 : index
    %c0_16 = arith.constant 0 : index
    %39 = vector.load %arg10[%c0_15, %c0_16] : memref<8x3xf32, #tpu.memory_space<vmem>>, vector<8x1xf32>
    %40 = arith.mulf %35, %39 : vector<8x1xf32>
    %cst_17 = arith.constant dense<0.000000e+00> : vector<8xf32>
    %41 = vector.multi_reduction <add>, %38, %cst_17 [1] : vector<8x128xf32> to vector<8xf32>
    %42 = vector.shape_cast %41 : vector<8xf32> to vector<8x1xf32>
    %43 = arith.addf %40, %42 : vector<8x1xf32>
    %c0_18 = arith.constant 0 : index
    %c0_19 = arith.constant 0 : index
    %44 = vector.load %arg10[%c0_18, %c0_19] : memref<8x3xf32, #tpu.memory_space<vmem>>, vector<8x1xf32>
    tpu.vector_store %arg10[%c0_18, %c0_19], %43 {strides = array<i32>} : memref<8x3xf32, #tpu.memory_space<vmem>>, vector<8x1xf32>,
    %c0_20 = arith.constant 0 : index
    %c0_21 = arith.constant 0 : index
    %45 = vector.load %arg11[%c0_20, %c0_21] : memref<8x3xf32, #tpu.memory_space<vmem>>, vector<8x1xf32>
    %46 = arith.mulf %35, %45 : vector<8x1xf32>
    %47 = arith.mulf %38, %23 : vector<8x128xf32>
    %cst_22 = arith.constant dense<0.000000e+00> : vector<8xf32>
    %48 = vector.multi_reduction <add>, %47, %cst_22 [1] : vector<8x128xf32> to vector<8xf32>
    %49 = vector.shape_cast %48 : vector<8xf32> to vector<8x1xf32>
    %50 = arith.addf %46, %49 : vector<8x1xf32>
    %c0_23 = arith.constant 0 : index
    %c0_24 = arith.constant 0 : index
    %51 = vector.load %arg11[%c0_23, %c0_24] : memref<8x3xf32, #tpu.memory_space<vmem>>, vector<8x1xf32>
    tpu.vector_store %arg11[%c0_23, %c0_24], %50 {strides = array<i32>} : memref<8x3xf32, #tpu.memory_space<vmem>>, vector<8x1xf32>,
    %52 = arith.cmpf ogt, %25, %32 : vector<8x1xf32>
    %c0_25 = arith.constant 0 : index
    %c0_26 = arith.constant 0 : index
    %53 = vector.load %arg12[%c0_25, %c0_26] : memref<8x3xi32, #tpu.memory_space<vmem>>, vector<8x1xi32>
    %54 = arith.select %52, %31, %53 : vector<8x1xi1>, vector<8x1xi32>
    %c0_27 = arith.constant 0 : index
    %c0_28 = arith.constant 0 : index
    %55 = vector.load %arg12[%c0_27, %c0_28] : memref<8x3xi32, #tpu.memory_space<vmem>>, vector<8x1xi32>
    tpu.vector_store %arg12[%c0_27, %c0_28], %54 {strides = array<i32>} : memref<8x3xi32, #tpu.memory_space<vmem>>, vector<8x1xi32>,
    %c0_29 = arith.constant 0 : index
    %c0_30 = arith.constant 0 : index
    %56 = vector.load %arg13[%c0_29, %c0_30] : memref<8x3xf32, #tpu.memory_space<vmem>>, vector<8x1xf32>
    %57 = arith.mulf %23, %12 : vector<8x128xf32>
    %cst_31 = arith.constant dense<0.000000e+00> : vector<8xf32>
    %58 = vector.multi_reduction <add>, %57, %cst_31 [1] : vector<8x128xf32> to vector<8xf32>
    %59 = vector.shape_cast %58 : vector<8xf32> to vector<8x1xf32>
    %60 = arith.addf %56, %59 : vector<8x1xf32>
    %c0_32 = arith.constant 0 : index
    %c0_33 = arith.constant 0 : index
    %61 = vector.load %arg13[%c0_32, %c0_33] : memref<8x3xf32, #tpu.memory_space<vmem>>, vector<8x1xf32>
    tpu.vector_store %arg13[%c0_32, %c0_33], %60 {strides = array<i32>} : memref<8x3xf32, #tpu.memory_space<vmem>>, vector<8x1xf32>,
    %c0_34 = arith.constant 0 : index
    %c0_35 = arith.constant 0 : index
    %62 = vector.load %arg9[%c0_34, %c0_35] : memref<8x3xf32, #tpu.memory_space<vmem>>, vector<8x1xf32>
    tpu.vector_store %arg9[%c0_34, %c0_35], %33 {strides = array<i32>} : memref<8x3xf32, #tpu.memory_space<vmem>>, vector<8x1xf32>,
    %c1 = arith.constant 1 : index
    %c0_36 = arith.constant 0 : index
    %c0_37 = arith.constant 0 : index
    %63 = vector.load %arg2[%c1, %c0_36, %c0_37] : memref<3x8x32xbf16, #tpu.memory_space<vmem>>, vector<1x8x32xbf16>
    %64 = vector.shape_cast %63 : vector<1x8x32xbf16> to vector<8x32xbf16>
    %cst_38 = arith.constant dense<0.000000e+00> : vector<8x128xf32>
    %65 = tpu.matmul %64, %3, %cst_38 {dimension_numbers = #tpu.dot_dimension_numbers<[1], [0], [0], [1], [0, 0, 1, 1], [], []>} : vector<8x32xbf16>, vector<32x128xbf16>, vector<8x128xf32> -> vector<8x128xf32>
    %66 = arith.truncf %65 : vector<8x128xf32> to vector<8x128xbf16>
    %c1_39 = arith.constant 1 : index
    %c0_40 = arith.constant 0 : index
    %c0_41 = arith.constant 0 : index
    %67 = vector.load %arg7[%c1_39, %c0_40, %c0_41] : memref<3x8x128xbf16, #tpu.memory_space<vmem>>, vector<1x8x128xbf16>
    %68 = vector.shape_cast %67 : vector<1x8x128xbf16> to vector<8x128xbf16>
    %69 = vector.shape_cast %66 : vector<8x128xbf16> to vector<1x8x128xbf16>
    tpu.vector_store %arg7[%c1_39, %c0_40, %c0_41], %69 {strides = array<i32>} : memref<3x8x128xbf16, #tpu.memory_space<vmem>>, vector<1x8x128xbf16>,
    %c250_i32_42 = arith.constant 250 : i32
    %70 = vector.broadcast %c250_i32_42 : i32 to vector<8x128xi32>
    %71 = arith.cmpi slt, %8, %70 : vector<8x128xi32>
    %cst_43 = arith.constant -1.000000e+30 : f32
    %72 = vector.broadcast %cst_43 : f32 to vector<8x128xf32>
    %73 = arith.select %71, %65, %72 : vector<8x128xi1>, vector<8x128xf32>
    %cst_44 = arith.constant dense<0xFF800000> : vector<8xf32>
    %74 = vector.multi_reduction <maximumf>, %73, %cst_44 [1] : vector<8x128xf32> to vector<8xf32>
    %75 = vector.shape_cast %74 : vector<8xf32> to vector<8x1xf32>
    %76 = vector.broadcast %75 : vector<8x1xf32> to vector<8x128xf32>
    %77 = arith.cmpf oeq, %73, %76 : vector<8x128xf32>
    %c1073741824_i32_45 = arith.constant 1073741824 : i32
    %78 = vector.broadcast %c1073741824_i32_45 : i32 to vector<8x128xi32>
    %79 = arith.select %77, %8, %78 : vector<8x128xi1>, vector<8x128xi32>
    %cst_46 = arith.constant dense<2147483647> : vector<8xi32>
    %80 = vector.multi_reduction <minsi>, %79, %cst_46 [1] : vector<8x128xi32> to vector<8xi32>
    %81 = vector.shape_cast %80 : vector<8xi32> to vector<8x1xi32>
    %c0_47 = arith.constant 0 : index
    %c1_48 = arith.constant 1 : index
    %82 = vector.load %arg9[%c0_47, %c1_48] : memref<8x3xf32, #tpu.memory_space<vmem>>, vector<8x1xf32>
    %83 = arith.maximumf %82, %75 : vector<8x1xf32>
    %84 = arith.subf %82, %83 : vector<8x1xf32>
    %85 = math.exp %84 : vector<8x1xf32>
    %86 = vector.broadcast %83 : vector<8x1xf32> to vector<8x128xf32>
    %87 = arith.subf %73, %86 : vector<8x128xf32>
    %88 = math.exp %87 : vector<8x128xf32>
    %c0_49 = arith.constant 0 : index
    %c1_50 = arith.constant 1 : index
    %89 = vector.load %arg10[%c0_49, %c1_50] : memref<8x3xf32, #tpu.memory_space<vmem>>, vector<8x1xf32>
    %90 = arith.mulf %85, %89 : vector<8x1xf32>
    %cst_51 = arith.constant dense<0.000000e+00> : vector<8xf32>
    %91 = vector.multi_reduction <add>, %88, %cst_51 [1] : vector<8x128xf32> to vector<8xf32>
    %92 = vector.shape_cast %91 : vector<8xf32> to vector<8x1xf32>
    %93 = arith.addf %90, %92 : vector<8x1xf32>
    %c0_52 = arith.constant 0 : index
    %c1_53 = arith.constant 1 : index
    %94 = vector.load %arg10[%c0_52, %c1_53] : memref<8x3xf32, #tpu.memory_space<vmem>>, vector<8x1xf32>
    tpu.vector_store %arg10[%c0_52, %c1_53], %93 {strides = array<i32>} : memref<8x3xf32, #tpu.memory_space<vmem>>, vector<8x1xf32>,
    %c0_54 = arith.constant 0 : index
    %c1_55 = arith.constant 1 : index
    %95 = vector.load %arg11[%c0_54, %c1_55] : memref<8x3xf32, #tpu.memory_space<vmem>>, vector<8x1xf32>
    %96 = arith.mulf %85, %95 : vector<8x1xf32>
    %97 = arith.mulf %88, %73 : vector<8x128xf32>
    %cst_56 = arith.constant dense<0.000000e+00> : vector<8xf32>
    %98 = vector.multi_reduction <add>, %97, %cst_56 [1] : vector<8x128xf32> to vector<8xf32>
    %99 = vector.shape_cast %98 : vector<8xf32> to vector<8x1xf32>
    %100 = arith.addf %96, %99 : vector<8x1xf32>
    %c0_57 = arith.constant 0 : index
    %c1_58 = arith.constant 1 : index
    %101 = vector.load %arg11[%c0_57, %c1_58] : memref<8x3xf32, #tpu.memory_space<vmem>>, vector<8x1xf32>
    tpu.vector_store %arg11[%c0_57, %c1_58], %100 {strides = array<i32>} : memref<8x3xf32, #tpu.memory_space<vmem>>, vector<8x1xf32>,
    %102 = arith.cmpf ogt, %75, %82 : vector<8x1xf32>
    %c0_59 = arith.constant 0 : index
    %c1_60 = arith.constant 1 : index
    %103 = vector.load %arg12[%c0_59, %c1_60] : memref<8x3xi32, #tpu.memory_space<vmem>>, vector<8x1xi32>
    %104 = arith.select %102, %81, %103 : vector<8x1xi1>, vector<8x1xi32>
    %c0_61 = arith.constant 0 : index
    %c1_62 = arith.constant 1 : index
    %105 = vector.load %arg12[%c0_61, %c1_62] : memref<8x3xi32, #tpu.memory_space<vmem>>, vector<8x1xi32>
    tpu.vector_store %arg12[%c0_61, %c1_62], %104 {strides = array<i32>} : memref<8x3xi32, #tpu.memory_space<vmem>>, vector<8x1xi32>,
    %c0_63 = arith.constant 0 : index
    %c1_64 = arith.constant 1 : index
    %106 = vector.load %arg13[%c0_63, %c1_64] : memref<8x3xf32, #tpu.memory_space<vmem>>, vector<8x1xf32>
    %107 = arith.mulf %73, %12 : vector<8x128xf32>
    %cst_65 = arith.constant dense<0.000000e+00> : vector<8xf32>
    %108 = vector.multi_reduction <add>, %107, %cst_65 [1] : vector<8x128xf32> to vector<8xf32>
    %109 = vector.shape_cast %108 : vector<8xf32> to vector<8x1xf32>
    %110 = arith.addf %106, %109 : vector<8x1xf32>
    %c0_66 = arith.constant 0 : index
    %c1_67 = arith.constant 1 : index
    %111 = vector.load %arg13[%c0_66, %c1_67] : memref<8x3xf32, #tpu.memory_space<vmem>>, vector<8x1xf32>
    tpu.vector_store %arg13[%c0_66, %c1_67], %110 {strides = array<i32>} : memref<8x3xf32, #tpu.memory_space<vmem>>, vector<8x1xf32>,
    %c0_68 = arith.constant 0 : index
    %c1_69 = arith.constant 1 : index
    %112 = vector.load %arg9[%c0_68, %c1_69] : memref<8x3xf32, #tpu.memory_space<vmem>>, vector<8x1xf32>
    tpu.vector_store %arg9[%c0_68, %c1_69], %83 {strides = array<i32>} : memref<8x3xf32, #tpu.memory_space<vmem>>, vector<8x1xf32>,
    %c2 = arith.constant 2 : index
    %c0_70 = arith.constant 0 : index
    %c0_71 = arith.constant 0 : index
    %113 = vector.load %arg2[%c2, %c0_70, %c0_71] : memref<3x8x32xbf16, #tpu.memory_space<vmem>>, vector<1x8x32xbf16>
    %114 = vector.shape_cast %113 : vector<1x8x32xbf16> to vector<8x32xbf16>
    %cst_72 = arith.constant dense<0.000000e+00> : vector<8x128xf32>
    %115 = tpu.matmul %114, %3, %cst_72 {dimension_numbers = #tpu.dot_dimension_numbers<[1], [0], [0], [1], [0, 0, 1, 1], [], []>} : vector<8x32xbf16>, vector<32x128xbf16>, vector<8x128xf32> -> vector<8x128xf32>
    %116 = arith.truncf %115 : vector<8x128xf32> to vector<8x128xbf16>
    %c2_73 = arith.constant 2 : index
    %c0_74 = arith.constant 0 : index
    %c0_75 = arith.constant 0 : index
    %117 = vector.load %arg7[%c2_73, %c0_74, %c0_75] : memref<3x8x128xbf16, #tpu.memory_space<vmem>>, vector<1x8x128xbf16>
    %118 = vector.shape_cast %117 : vector<1x8x128xbf16> to vector<8x128xbf16>
    %119 = vector.shape_cast %116 : vector<8x128xbf16> to vector<1x8x128xbf16>
    tpu.vector_store %arg7[%c2_73, %c0_74, %c0_75], %119 {strides = array<i32>} : memref<3x8x128xbf16, #tpu.memory_space<vmem>>, vector<1x8x128xbf16>,
    %c250_i32_76 = arith.constant 250 : i32
    %120 = vector.broadcast %c250_i32_76 : i32 to vector<8x128xi32>
    %121 = arith.cmpi slt, %8, %120 : vector<8x128xi32>
    %cst_77 = arith.constant -1.000000e+30 : f32
    %122 = vector.broadcast %cst_77 : f32 to vector<8x128xf32>
    %123 = arith.select %121, %115, %122 : vector<8x128xi1>, vector<8x128xf32>
    %cst_78 = arith.constant dense<0xFF800000> : vector<8xf32>
    %124 = vector.multi_reduction <maximumf>, %123, %cst_78 [1] : vector<8x128xf32> to vector<8xf32>
    %125 = vector.shape_cast %124 : vector<8xf32> to vector<8x1xf32>
    %126 = vector.broadcast %125 : vector<8x1xf32> to vector<8x128xf32>
    %127 = arith.cmpf oeq, %123, %126 : vector<8x128xf32>
    %c1073741824_i32_79 = arith.constant 1073741824 : i32
    %128 = vector.broadcast %c1073741824_i32_79 : i32 to vector<8x128xi32>
    %129 = arith.select %127, %8, %128 : vector<8x128xi1>, vector<8x128xi32>
    %cst_80 = arith.constant dense<2147483647> : vector<8xi32>
    %130 = vector.multi_reduction <minsi>, %129, %cst_80 [1] : vector<8x128xi32> to vector<8xi32>
    %131 = vector.shape_cast %130 : vector<8xi32> to vector<8x1xi32>
    %c0_81 = arith.constant 0 : index
    %c2_82 = arith.constant 2 : index
    %132 = vector.load %arg9[%c0_81, %c2_82] : memref<8x3xf32, #tpu.memory_space<vmem>>, vector<8x1xf32>
    %133 = arith.maximumf %132, %125 : vector<8x1xf32>
    %134 = arith.subf %132, %133 : vector<8x1xf32>
    %135 = math.exp %134 : vector<8x1xf32>
    %136 = vector.broadcast %133 : vector<8x1xf32> to vector<8x128xf32>
    %137 = arith.subf %123, %136 : vector<8x128xf32>
    %138 = math.exp %137 : vector<8x128xf32>
    %c0_83 = arith.constant 0 : index
    %c2_84 = arith.constant 2 : index
    %139 = vector.load %arg10[%c0_83, %c2_84] : memref<8x3xf32, #tpu.memory_space<vmem>>, vector<8x1xf32>
    %140 = arith.mulf %135, %139 : vector<8x1xf32>
    %cst_85 = arith.constant dense<0.000000e+00> : vector<8xf32>
    %141 = vector.multi_reduction <add>, %138, %cst_85 [1] : vector<8x128xf32> to vector<8xf32>
    %142 = vector.shape_cast %141 : vector<8xf32> to vector<8x1xf32>
    %143 = arith.addf %140, %142 : vector<8x1xf32>
    %c0_86 = arith.constant 0 : index
    %c2_87 = arith.constant 2 : index
    %144 = vector.load %arg10[%c0_86, %c2_87] : memref<8x3xf32, #tpu.memory_space<vmem>>, vector<8x1xf32>
    tpu.vector_store %arg10[%c0_86, %c2_87], %143 {strides = array<i32>} : memref<8x3xf32, #tpu.memory_space<vmem>>, vector<8x1xf32>,
    %c0_88 = arith.constant 0 : index
    %c2_89 = arith.constant 2 : index
    %145 = vector.load %arg11[%c0_88, %c2_89] : memref<8x3xf32, #tpu.memory_space<vmem>>, vector<8x1xf32>
    %146 = arith.mulf %135, %145 : vector<8x1xf32>
    %147 = arith.mulf %138, %123 : vector<8x128xf32>
    %cst_90 = arith.constant dense<0.000000e+00> : vector<8xf32>
    %148 = vector.multi_reduction <add>, %147, %cst_90 [1] : vector<8x128xf32> to vector<8xf32>
    %149 = vector.shape_cast %148 : vector<8xf32> to vector<8x1xf32>
    %150 = arith.addf %146, %149 : vector<8x1xf32>
    %c0_91 = arith.constant 0 : index
    %c2_92 = arith.constant 2 : index
    %151 = vector.load %arg11[%c0_91, %c2_92] : memref<8x3xf32, #tpu.memory_space<vmem>>, vector<8x1xf32>
    tpu.vector_store %arg11[%c0_91, %c2_92], %150 {strides = array<i32>} : memref<8x3xf32, #tpu.memory_space<vmem>>, vector<8x1xf32>,
    %152 = arith.cmpf ogt, %125, %132 : vector<8x1xf32>
    %c0_93 = arith.constant 0 : index
    %c2_94 = arith.constant 2 : index
    %153 = vector.load %arg12[%c0_93, %c2_94] : memref<8x3xi32, #tpu.memory_space<vmem>>, vector<8x1xi32>
    %154 = arith.select %152, %131, %153 : vector<8x1xi1>, vector<8x1xi32>
    %c0_95 = arith.constant 0 : index
    %c2_96 = arith.constant 2 : index
    %155 = vector.load %arg12[%c0_95, %c2_96] : memref<8x3xi32, #tpu.memory_space<vmem>>, vector<8x1xi32>
    tpu.vector_store %arg12[%c0_95, %c2_96], %154 {strides = array<i32>} : memref<8x3xi32, #tpu.memory_space<vmem>>, vector<8x1xi32>,
    %c0_97 = arith.constant 0 : index
    %c2_98 = arith.constant 2 : index
    %156 = vector.load %arg13[%c0_97, %c2_98] : memref<8x3xf32, #tpu.memory_space<vmem>>, vector<8x1xf32>
    %157 = arith.mulf %123, %12 : vector<8x128xf32>
    %cst_99 = arith.constant dense<0.000000e+00> : vector<8xf32>
    %158 = vector.multi_reduction <add>, %157, %cst_99 [1] : vector<8x128xf32> to vector<8xf32>
    %159 = vector.shape_cast %158 : vector<8xf32> to vector<8x1xf32>
    %160 = arith.addf %156, %159 : vector<8x1xf32>
    %c0_100 = arith.constant 0 : index
    %c2_101 = arith.constant 2 : index
    %161 = vector.load %arg13[%c0_100, %c2_101] : memref<8x3xf32, #tpu.memory_space<vmem>>, vector<8x1xf32>
    tpu.vector_store %arg13[%c0_100, %c2_101], %160 {strides = array<i32>} : memref<8x3xf32, #tpu.memory_space<vmem>>, vector<8x1xf32>,
    %c0_102 = arith.constant 0 : index
    %c2_103 = arith.constant 2 : index
    %162 = vector.load %arg9[%c0_102, %c2_103] : memref<8x3xf32, #tpu.memory_space<vmem>>, vector<8x1xf32>
    tpu.vector_store %arg9[%c0_102, %c2_103], %133 {strides = array<i32>} : memref<8x3xf32, #tpu.memory_space<vmem>>, vector<8x1xf32>,
    %c1_i32 = arith.constant 1 : i32
    %163 = arith.cmpi eq, %arg1, %c1_i32 : i32
    %164 = arith.extui %163 : i1 to i32
    %c0_i32_104 = arith.constant 0 : i32
    %165 = arith.cmpi ne, %164, %c0_i32_104 : i32
    scf.if %165 {
      %c0_105 = arith.constant 0 : index
      %c0_106 = arith.constant 0 : index
      %166 = vector.load %arg5[%c0_105, %c0_106] : memref<8x1xf32, #tpu.memory_space<vmem>>, vector<8x1xf32>
      %c0_107 = arith.constant 0 : index
      %c0_108 = arith.constant 0 : index
      %167 = vector.load %arg6[%c0_107, %c0_108] : memref<8x1xf32, #tpu.memory_space<vmem>>, vector<8x1xf32>
      %cst_109 = arith.constant 0.000000e+00 : f32
      %168 = vector.broadcast %cst_109 : f32 to vector<8x1xf32>
      %cst_110 = arith.constant 0.000000e+00 : f32
      %169 = vector.broadcast %cst_110 : f32 to vector<8x1xf32>
      %cst_111 = arith.constant 0.000000e+00 : f32
      %170 = vector.broadcast %cst_111 : f32 to vector<8x1xf32>
      %cst_112 = arith.constant 0.000000e+00 : f32
      %171 = vector.broadcast %cst_112 : f32 to vector<8x1xf32>
      %c0_113 = arith.constant 0 : index
      %c0_114 = arith.constant 0 : index
      %172 = vector.load %arg9[%c0_113, %c0_114] : memref<8x3xf32, #tpu.memory_space<vmem>>, vector<8x1xf32>
      %c0_115 = arith.constant 0 : index
      %c0_116 = arith.constant 0 : index
      %173 = vector.load %arg10[%c0_115, %c0_116] : memref<8x3xf32, #tpu.memory_space<vmem>>, vector<8x1xf32>
      %cst_117 = arith.constant 1.000000e+00 : f32
      %174 = vector.broadcast %cst_117 : f32 to vector<8x1xf32>
      %175 = arith.divf %174, %173 : vector<8x1xf32>
      %176 = math.log %173 : vector<8x1xf32>
      %c0_118 = arith.constant 0 : index
      %c0_119 = arith.constant 0 : index
      %177 = vector.load %arg13[%c0_118, %c0_119] : memref<8x3xf32, #tpu.memory_space<vmem>>, vector<8x1xf32>
      %178 = arith.subf %177, %172 : vector<8x1xf32>
      %179 = math.exp %178 : vector<8x1xf32>
      %180 = arith.mulf %179, %175 : vector<8x1xf32>
      %c0_120 = arith.constant 0 : index
      %c0_121 = arith.constant 0 : index
      %181 = vector.load %arg13[%c0_120, %c0_121] : memref<8x3xf32, #tpu.memory_space<vmem>>, vector<8x1xf32>
      %182 = arith.subf %181, %172 : vector<8x1xf32>
      %183 = arith.subf %182, %176 : vector<8x1xf32>
      %c0_122 = arith.constant 0 : index
      %c0_123 = arith.constant 0 : index
      %184 = vector.load %arg11[%c0_122, %c0_123] : memref<8x3xf32, #tpu.memory_space<vmem>>, vector<8x1xf32>
      %185 = arith.mulf %184, %175 : vector<8x1xf32>
      %186 = arith.subf %185, %172 : vector<8x1xf32>
      %187 = arith.subf %186, %176 : vector<8x1xf32>
      %c0_124 = arith.constant 0 : index
      %c0_125 = arith.constant 0 : index
      %188 = vector.load %arg12[%c0_124, %c0_125] : memref<8x3xi32, #tpu.memory_space<vmem>>, vector<8x1xi32>
      %189 = arith.cmpi ne, %188, %4 : vector<8x1xi32>
      %190 = arith.extui %189 : vector<8x1xi1> to vector<8x1xi32>
      %191 = arith.sitofp %190 : vector<8x1xi32> to vector<8x1xf32>
      %cst_126 = arith.constant 1.000000e+00 : f32
      %192 = vector.broadcast %cst_126 : f32 to vector<8x1xf32>
      %193 = arith.mulf %192, %175 : vector<8x1xf32>
      %194 = math.exp %193 : vector<8x1xf32>
      %195 = arith.mulf %194, %191 : vector<8x1xf32>
      %196 = arith.mulf %195, %167 : vector<8x1xf32>
      %197 = arith.addf %168, %196 : vector<8x1xf32>
      %cst_127 = arith.constant -1.000000e+00 : f32
      %198 = vector.broadcast %cst_127 : f32 to vector<8x1xf32>
      %199 = arith.mulf %198, %180 : vector<8x1xf32>
      %200 = math.exp %199 : vector<8x1xf32>
      %201 = arith.addf %169, %200 : vector<8x1xf32>
      %202 = arith.mulf %183, %166 : vector<8x1xf32>
      %203 = arith.subf %170, %202 : vector<8x1xf32>
      %204 = arith.mulf %187, %166 : vector<8x1xf32>
      %205 = arith.addf %171, %204 : vector<8x1xf32>
      %c0_128 = arith.constant 0 : index
      %c1_129 = arith.constant 1 : index
      %206 = vector.load %arg9[%c0_128, %c1_129] : memref<8x3xf32, #tpu.memory_space<vmem>>, vector<8x1xf32>
      %c0_130 = arith.constant 0 : index
      %c1_131 = arith.constant 1 : index
      %207 = vector.load %arg10[%c0_130, %c1_131] : memref<8x3xf32, #tpu.memory_space<vmem>>, vector<8x1xf32>
      %cst_132 = arith.constant 1.000000e+00 : f32
      %208 = vector.broadcast %cst_132 : f32 to vector<8x1xf32>
      %209 = arith.divf %208, %207 : vector<8x1xf32>
      %210 = math.log %207 : vector<8x1xf32>
      %c0_133 = arith.constant 0 : index
      %c1_134 = arith.constant 1 : index
      %211 = vector.load %arg13[%c0_133, %c1_134] : memref<8x3xf32, #tpu.memory_space<vmem>>, vector<8x1xf32>
      %212 = arith.subf %211, %206 : vector<8x1xf32>
      %213 = math.exp %212 : vector<8x1xf32>
      %214 = arith.mulf %213, %209 : vector<8x1xf32>
      %c0_135 = arith.constant 0 : index
      %c1_136 = arith.constant 1 : index
      %215 = vector.load %arg13[%c0_135, %c1_136] : memref<8x3xf32, #tpu.memory_space<vmem>>, vector<8x1xf32>
      %216 = arith.subf %215, %206 : vector<8x1xf32>
      %217 = arith.subf %216, %210 : vector<8x1xf32>
      %c0_137 = arith.constant 0 : index
      %c1_138 = arith.constant 1 : index
      %218 = vector.load %arg11[%c0_137, %c1_138] : memref<8x3xf32, #tpu.memory_space<vmem>>, vector<8x1xf32>
      %219 = arith.mulf %218, %209 : vector<8x1xf32>
      %220 = arith.subf %219, %206 : vector<8x1xf32>
      %221 = arith.subf %220, %210 : vector<8x1xf32>
      %c0_139 = arith.constant 0 : index
      %c1_140 = arith.constant 1 : index
      %222 = vector.load %arg12[%c0_139, %c1_140] : memref<8x3xi32, #tpu.memory_space<vmem>>, vector<8x1xi32>
      %223 = arith.cmpi ne, %222, %4 : vector<8x1xi32>
      %224 = arith.extui %223 : vector<8x1xi1> to vector<8x1xi32>
      %225 = arith.sitofp %224 : vector<8x1xi32> to vector<8x1xf32>
      %cst_141 = arith.constant 1.000000e+00 : f32
      %226 = vector.broadcast %cst_141 : f32 to vector<8x1xf32>
      %227 = arith.mulf %226, %209 : vector<8x1xf32>
      %228 = math.exp %227 : vector<8x1xf32>
      %229 = arith.mulf %228, %225 : vector<8x1xf32>
      %230 = arith.mulf %229, %167 : vector<8x1xf32>
      %231 = arith.addf %197, %230 : vector<8x1xf32>
      %cst_142 = arith.constant -1.000000e+00 : f32
      %232 = vector.broadcast %cst_142 : f32 to vector<8x1xf32>
      %233 = arith.mulf %232, %214 : vector<8x1xf32>
      %234 = math.exp %233 : vector<8x1xf32>
      %235 = arith.addf %201, %234 : vector<8x1xf32>
      %236 = arith.mulf %217, %166 : vector<8x1xf32>
      %237 = arith.subf %203, %236 : vector<8x1xf32>
      %238 = arith.mulf %221, %166 : vector<8x1xf32>
      %239 = arith.addf %205, %238 : vector<8x1xf32>
      %c0_143 = arith.constant 0 : index
      %c2_144 = arith.constant 2 : index
      %240 = vector.load %arg9[%c0_143, %c2_144] : memref<8x3xf32, #tpu.memory_space<vmem>>, vector<8x1xf32>
      %c0_145 = arith.constant 0 : index
      %c2_146 = arith.constant 2 : index
      %241 = vector.load %arg10[%c0_145, %c2_146] : memref<8x3xf32, #tpu.memory_space<vmem>>, vector<8x1xf32>
      %cst_147 = arith.constant 1.000000e+00 : f32
      %242 = vector.broadcast %cst_147 : f32 to vector<8x1xf32>
      %243 = arith.divf %242, %241 : vector<8x1xf32>
      %244 = math.log %241 : vector<8x1xf32>
      %c0_148 = arith.constant 0 : index
      %c2_149 = arith.constant 2 : index
      %245 = vector.load %arg13[%c0_148, %c2_149] : memref<8x3xf32, #tpu.memory_space<vmem>>, vector<8x1xf32>
      %246 = arith.subf %245, %240 : vector<8x1xf32>
      %247 = math.exp %246 : vector<8x1xf32>
      %248 = arith.mulf %247, %243 : vector<8x1xf32>
      %c0_150 = arith.constant 0 : index
      %c2_151 = arith.constant 2 : index
      %249 = vector.load %arg13[%c0_150, %c2_151] : memref<8x3xf32, #tpu.memory_space<vmem>>, vector<8x1xf32>
      %250 = arith.subf %249, %240 : vector<8x1xf32>
      %251 = arith.subf %250, %244 : vector<8x1xf32>
      %c0_152 = arith.constant 0 : index
      %c2_153 = arith.constant 2 : index
      %252 = vector.load %arg11[%c0_152, %c2_153] : memref<8x3xf32, #tpu.memory_space<vmem>>, vector<8x1xf32>
      %253 = arith.mulf %252, %243 : vector<8x1xf32>
      %254 = arith.subf %253, %240 : vector<8x1xf32>
      %255 = arith.subf %254, %244 : vector<8x1xf32>
      %c0_154 = arith.constant 0 : index
      %c2_155 = arith.constant 2 : index
      %256 = vector.load %arg12[%c0_154, %c2_155] : memref<8x3xi32, #tpu.memory_space<vmem>>, vector<8x1xi32>
      %257 = arith.cmpi ne, %256, %4 : vector<8x1xi32>
      %258 = arith.extui %257 : vector<8x1xi1> to vector<8x1xi32>
      %259 = arith.sitofp %258 : vector<8x1xi32> to vector<8x1xf32>
      %cst_156 = arith.constant 1.000000e+00 : f32
      %260 = vector.broadcast %cst_156 : f32 to vector<8x1xf32>
      %261 = arith.mulf %260, %243 : vector<8x1xf32>
      %262 = math.exp %261 : vector<8x1xf32>
      %263 = arith.mulf %262, %259 : vector<8x1xf32>
      %264 = arith.mulf %263, %167 : vector<8x1xf32>
      %265 = arith.addf %231, %264 : vector<8x1xf32>
      %cst_157 = arith.constant -1.000000e+00 : f32
      %266 = vector.broadcast %cst_157 : f32 to vector<8x1xf32>
      %267 = arith.mulf %266, %248 : vector<8x1xf32>
      %268 = math.exp %267 : vector<8x1xf32>
      %269 = arith.addf %235, %268 : vector<8x1xf32>
      %270 = arith.mulf %251, %166 : vector<8x1xf32>
      %271 = arith.subf %237, %270 : vector<8x1xf32>
      %272 = arith.mulf %255, %166 : vector<8x1xf32>
      %273 = arith.addf %239, %272 : vector<8x1xf32>
      %cst_158 = arith.constant 1.34985876 : f32
      %274 = vector.broadcast %cst_158 : f32 to vector<8x1xf32>
      %275 = arith.mulf %274, %265 : vector<8x1xf32>
      %276 = arith.mulf %275, %269 : vector<8x1xf32>
      %cst_159 = arith.constant 1.000000e+00 : f32
      %277 = vector.broadcast %cst_159 : f32 to vector<8x1xf32>
      %278 = arith.addf %277, %276 : vector<8x1xf32>
      %279 = math.log %278 : vector<8x1xf32>
      %280 = arith.mulf %279, %166 : vector<8x1xf32>
      %cst_160 = arith.constant 0.333333343 : f32
      %281 = vector.broadcast %cst_160 : f32 to vector<8x1xf32>
      %282 = arith.mulf %271, %281 : vector<8x1xf32>
      %283 = arith.addf %280, %282 : vector<8x1xf32>
      %284 = arith.subf %283, %273 : vector<8x1xf32>
      %c0_161 = arith.constant 0 : index
      %c0_162 = arith.constant 0 : index
      %285 = vector.load %arg8[%c0_161, %c0_162] : memref<8x1xf32, #tpu.memory_space<vmem>>, vector<8x1xf32>
      tpu.vector_store %arg8[%c0_161, %c0_162], %284 {strides = array<i32>} : memref<8x1xf32, #tpu.memory_space<vmem>>, vector<8x1xf32>,
    } else {
    }
    return
  }
  func.func @transform_0(%arg0: i32, %arg1: i32) -> (i32, i32, i32) {
    %c0_i32 = arith.constant 0 : i32
    %c0_i32_0 = arith.constant 0 : i32
    %c0_i32_1 = arith.constant 0 : i32
    return %c0_i32, %arg0, %c0_i32_0 : i32, i32, i32
  }
  func.func @transform_1(%arg0: i32, %arg1: i32) -> (i32, i32) {
    %c0_i32 = arith.constant 0 : i32
    %c0_i32_0 = arith.constant 0 : i32
    return %c0_i32, %arg1 : i32, i32
  }
  func.func @transform_2(%arg0: i32, %arg1: i32) -> (i32, i32) {
    %c0_i32 = arith.constant 0 : i32
    %c0_i32_0 = arith.constant 0 : i32
    return %arg0, %c0_i32 : i32, i32
  }
  func.func @transform_3(%arg0: i32, %arg1: i32) -> (i32, i32) {
    %c0_i32 = arith.constant 0 : i32
    %c0_i32_0 = arith.constant 0 : i32
    return %arg0, %c0_i32 : i32, i32
  }
  func.func @transform_4(%arg0: i32, %arg1: i32) -> (i32, i32) {
    %c0_i32 = arith.constant 0 : i32
    %c0_i32_0 = arith.constant 0 : i32
    return %arg0, %c0_i32 : i32, i32
  }
  func.func @transform_5(%arg0: i32, %arg1: i32) -> (i32, i32, i32) {
    %c0_i32 = arith.constant 0 : i32
    %c0_i32_0 = arith.constant 0 : i32
    return %c0_i32, %arg0, %arg1 : i32, i32, i32
  }
  func.func @transform_6(%arg0: i32, %arg1: i32) -> (i32, i32) {
    %c0_i32 = arith.constant 0 : i32
    %c0_i32_0 = arith.constant 0 : i32
    return %arg0, %c0_i32 : i32, i32
  }
}

</mosaic_0001>

<llo_original>
// kernel: tpu_custom_call.1
$region0: #{tpu_custom_call.1}
  #allocation0 [shape = 'u32[]', space=smem, size = 0x4, offset = 0x4, fixed_abs, tag = 'smem constant byte address 0x4 - core index']
  #allocation1 [shape = 'u32[144,128]{1,0:T(1,128)}', space=vmem, size = 0x12000, scoped, tag = 'internal scratch']
  #allocation2 [shape = 'f32[8,3]{1,0:T(8,128)}', space=vmem, size = 0x1000, scoped, tag = 'scratch operand']
  #allocation3 [shape = 'f32[8,3]{1,0:T(8,128)}', space=vmem, size = 0x1000, scoped, tag = 'scratch operand']
  #allocation4 [shape = 'f32[8,3]{1,0:T(8,128)}', space=vmem, size = 0x1000, scoped, tag = 'scratch operand']
  #allocation5 [shape = 's32[8,3]{1,0:T(8,128)}', space=vmem, size = 0x1000, scoped, tag = 'scratch operand']
  #allocation6 [shape = 'f32[8,3]{1,0:T(8,128)}', space=vmem, size = 0x1000, scoped, tag = 'scratch operand']
  %s0 = inlined_call_operand.hbm [shape: bf16[3,16,32], index: 0, kind: input, shape index: {}]
  %s1 = inlined_call_operand.hbm [shape: bf16[32,256], index: 1, kind: input, shape index: {}]
  %s2 = inlined_call_operand.hbm [shape: s32[16,1], index: 2, kind: input, shape index: {}]
  %s3 = inlined_call_operand.hbm [shape: f32[16,1], index: 3, kind: input, shape index: {}]
  %s4 = inlined_call_operand.hbm [shape: f32[16,1], index: 4, kind: input, shape index: {}]
  %s5 = inlined_call_operand.hbm [shape: bf16[3,16,256], index: 5, kind: output, shape index: {0}]
  %s6 = inlined_call_operand.hbm [shape: f32[16,1], index: 6, kind: output, shape index: {1}]
  %7 = xla_tuple %s5, %s6
  %s8 = sld [smem:[#allocation0]]
  $region89: #{tpu_custom_call.1} parent=0
    _
  %s10 = ssub.s32 1, %s8
  %s11 = scalar_select 0, %s10, %s8
  $region1: #{tpu_custom_call.1} parent=0
    #allocation7 [shape = 'u8[12288]{0}', space=vmem, size = 0x3000, scoped, tag = 'input window, operand 0']
    #allocation8 [shape = 's32[2]{0}', space=sflag, size = 0x8, scoped, tag = 'scoped memory for tpu_custom_call.1']
    #allocation9 [shape = 's32[2]{0}', space=sflag, size = 0x8, scoped, tag = 'scoped memory for tpu_custom_call.1']
    #allocation10 [shape = 'u8[16384]{0}', space=vmem, size = 0x4000, scoped, tag = 'input window, operand 1']
    #allocation11 [shape = 's32[2]{0}', space=sflag, size = 0x8, scoped, tag = 'scoped memory for tpu_custom_call.1']
    #allocation12 [shape = 'u8[8192]{0}', space=vmem, size = 0x2000, scoped, tag = 'input window, operand 2']
    #allocation13 [shape = 'u8[8192]{0}', space=vmem, size = 0x2000, scoped, tag = 'input window, operand 3']
    #allocation14 [shape = 's32[2]{0}', space=sflag, size = 0x8, scoped, tag = 'scoped memory for tpu_custom_call.1']
    #allocation15 [shape = 'u8[8192]{0}', space=vmem, size = 0x2000, scoped, tag = 'input window, operand 4']
    #allocation16 [shape = 'u8[12288]{0}', space=vmem, size = 0x3000, scoped, tag = 'output window, operand 0']
    #allocation17 [shape = 'u8[8192]{0}', space=vmem, size = 0x2000, scoped, tag = 'output window, operand 1']
    #allocation18 [shape = 's32[2]{0}', space=sflag, size = 0x8, scoped, tag = 'scoped memory for tpu_custom_call.1']
    %12 = vsyncpa [#allocation8], 0
    %s13 = scalar_lea.sflag [#allocation8], 1
    %14 = vsyncpa %s13, 0
    %15 = vsyncpa [#allocation11], 0
    %s16 = scalar_lea.sflag [#allocation11], 1
    %17 = vsyncpa %s16, 0
    %18 = vsyncpa [#allocation14], 0
    %s19 = scalar_lea.sflag [#allocation14], 1
    %20 = vsyncpa %s19, 0
    %21 = vsyncpa [#allocation9], 0
    %s22 = scalar_lea.sflag [#allocation9], 1
    %23 = vsyncpa %s22, 0
    %24 = vsyncpa [#allocation18], 0
    %s25 = scalar_lea.sflag [#allocation18], 1
    %26 = vsyncpa %s25, 0
    loop: start=0, step=1, limit=6
    $region2: #{tpu_custom_call.1} parent=1 // loop_pre_header
      _
    $region3: #{tpu_custom_call.1} parent=1 // loop_header
      %s28 = sphi 0, %s32
      %p29 = scmp.ge.s32.totalorder %s28, 6
      %s35 = sphi 0, %s47
      %s36 = sphi 0, %s43
      %s37 = sphi 0, %s35
      %s38 = sphi 0, %s36
      %s39 = sphi 0, %s37
      %s40 = sphi 0, %s38
      %s50 = sphi 0, %s52
      %s53 = sphi 0, %s50
      %s54 = sphi 0, %s53
      %s70 = sphi 0, %s54
      %s76 = sphi 0, %s78
      %s79 = sphi 0, %s76
      %s80 = sphi 0, %s79
      %s96 = sphi 0, %s80
      %s102 = sphi 0, %s104
      %s105 = sphi 0, %s102
      %s106 = sphi 0, %s105
      %s122 = sphi 0, %s106
      %s128 = sphi 0, %s130
      %s131 = sphi 0, %s128
      %s132 = sphi 0, %s131
      %s148 = sphi 0, %s132
      %s154 = sphi 0, %s156
      %s157 = sphi 0, %s154
      %s158 = sphi 0, %s157
      %s174 = sphi 0, %s158
      %s182 = sphi 0, %s184
      %s185 = sphi 0, %s182
      %s186 = sphi 0, %s185
      %s202 = sphi 0, %s186
      %s208 = sphi 0, %s210
      %s211 = sphi 0, %s208
      %s212 = sphi 0, %s211
      %s228 = sphi 0, %s212
    $region4: #{tpu_custom_call.1} parent=1 // loop_header_branch
      %31 = sbr.rel (%p29) target = $region8
    $region5: #{tpu_custom_call.1} parent=1 // loop_body
      %s33 = ssub.s32 %s28, 1
      %s34 = ssub.s32 %s28, 2
      %s41 = sadd.s32 1, %s36
      %p42 = scmp.ge.s32.totalorder %s41, 2
      %s43 = scalar_select %p42, 0, %s41
      %s44 = sadd.s32 1, %s35
      %s45 = scalar_select %p42, %s44, %s35
      %p46 = scmp.ge.s32.totalorder %s45, 2
      %s47 = scalar_select %p46, 0, %s45
      %s48 = ssub.s32 %s35, %s47
      %p49 = scmp.eq.s32.totalorder %s48, 0
      %s51 = sadd.s32 %s50, 1
      %s52 = scalar_select %p49, %s50, %s51
      %p55 = pneg %p49
      %p56 = scmp.eq.s32.totalorder %s28, 3
      %p57 = por %p55, %p56
      %p58 = scmp.ne.s32.totalorder %s50, %s53
      %p59 = scmp.eq.s32.totalorder %s28, 0
      %p60 = por %p58, %p59
      %p61 = scmp.ne.s32.totalorder %s50, %s53
      %p62 = scmp.eq.s32.totalorder %s33, 3
      %p63 = por %p61, %p62
      %p64 = scmp.ne.s32.totalorder %s53, %s54
      %p65 = scmp.eq.s32.totalorder %s33, 0
      %p66 = por %p64, %p65
      %p67 = scmp.ne.s32.totalorder %s53, %s54
      %p68 = scmp.eq.s32.totalorder %s34, 3
      %p69 = por %p67, %p68
      %p71 = scmp.ne.s32.totalorder %s54, %s70
      %p72 = scmp.eq.s32.totalorder %s34, 0
      %p73 = por %p71, %p72
      %s74 = ssub.s32 %s36, %s43
      %p75 = scmp.eq.s32.totalorder %s74, 0
      %s77 = sadd.s32 %s76, 1
      %s78 = scalar_select %p75, %s76, %s77
      %p81 = pneg %p75
      %p82 = scmp.eq.s32.totalorder %s28, 3
      %p83 = por %p81, %p82
      %p84 = scmp.ne.s32.totalorder %s76, %s79
      %p85 = scmp.eq.s32.totalorder %s28, 0
      %p86 = por %p84, %p85
      %p87 = scmp.ne.s32.totalorder %s76, %s79
      %p88 = scmp.eq.s32.totalorder %s33, 3
      %p89 = por %p87, %p88
      %p90 = scmp.ne.s32.totalorder %s79, %s80
      %p91 = scmp.eq.s32.totalorder %s33, 0
      %p92 = por %p90, %p91
      %p93 = scmp.ne.s32.totalorder %s79, %s80
      %p94 = scmp.eq.s32.totalorder %s34, 3
      %p95 = por %p93, %p94
      %p97 = scmp.ne.s32.totalorder %s80, %s96
      %p98 = scmp.eq.s32.totalorder %s34, 0
      %p99 = por %p97, %p98
      %s100 = ssub.s32 %s35, %s47
      %p101 = scmp.eq.s32.totalorder %s100, 0
      %s103 = sadd.s32 %s102, 1
      %s104 = scalar_select %p101, %s102, %s103
      %p107 = pneg %p101
      %p108 = scmp.eq.s32.totalorder %s28, 3
      %p109 = por %p107, %p108
      %p110 = scmp.ne.s32.totalorder %s102, %s105
      %p111 = scmp.eq.s32.totalorder %s28, 0
      %p112 = por %p110, %p111
      %p113 = scmp.ne.s32.totalorder %s102, %s105
      %p114 = scmp.eq.s32.totalorder %s33, 3
      %p115 = por %p113, %p114
      %p116 = scmp.ne.s32.totalorder %s105, %s106
      %p117 = scmp.eq.s32.totalorder %s33, 0
      %p118 = por %p116, %p117
      %p119 = scmp.ne.s32.totalorder %s105, %s106
      %p120 = scmp.eq.s32.totalorder %s34, 3
      %p121 = por %p119, %p120
      %p123 = scmp.ne.s32.totalorder %s106, %s122
      %p124 = scmp.eq.s32.totalorder %s34, 0
      %p125 = por %p123, %p124
      %s126 = ssub.s32 %s35, %s47
      %p127 = scmp.eq.s32.totalorder %s126, 0
      %s129 = sadd.s32 %s128, 1
      %s130 = scalar_select %p127, %s128, %s129
      %p133 = pneg %p127
      %p134 = scmp.eq.s32.totalorder %s28, 3
      %p135 = por %p133, %p134
      %p136 = scmp.ne.s32.totalorder %s128, %s131
      %p137 = scmp.eq.s32.totalorder %s28, 0
      %p138 = por %p136, %p137
      %p139 = scmp.ne.s32.totalorder %s128, %s131
      %p140 = scmp.eq.s32.totalorder %s33, 3
      %p141 = por %p139, %p140
      %p142 = scmp.ne.s32.totalorder %s131, %s132
      %p143 = scmp.eq.s32.totalorder %s33, 0
      %p144 = por %p142, %p143
      %p145 = scmp.ne.s32.totalorder %s131, %s132
      %p146 = scmp.eq.s32.totalorder %s34, 3
      %p147 = por %p145, %p146
      %p149 = scmp.ne.s32.totalorder %s132, %s148
      %p150 = scmp.eq.s32.totalorder %s34, 0
      %p151 = por %p149, %p150
      %s152 = ssub.s32 %s35, %s47
      %p153 = scmp.eq.s32.totalorder %s152, 0
      %s155 = sadd.s32 %s154, 1
      %s156 = scalar_select %p153, %s154, %s155
      %p159 = pneg %p153
      %p160 = scmp.eq.s32.totalorder %s28, 3
      %p161 = por %p159, %p160
      %p162 = scmp.ne.s32.totalorder %s154, %s157
      %p163 = scmp.eq.s32.totalorder %s28, 0
      %p164 = por %p162, %p163
      %p165 = scmp.ne.s32.totalorder %s154, %s157
      %p166 = scmp.eq.s32.totalorder %s33, 3
      %p167 = por %p165, %p166
      %p168 = scmp.ne.s32.totalorder %s157, %s158
      %p169 = scmp.eq.s32.totalorder %s33, 0
      %p170 = por %p168, %p169
      %p171 = scmp.ne.s32.totalorder %s157, %s158
      %p172 = scmp.eq.s32.totalorder %s34, 3
      %p173 = por %p171, %p172
      %p175 = scmp.ne.s32.totalorder %s158, %s174
      %p176 = scmp.eq.s32.totalorder %s34, 0
      %p177 = por %p175, %p176
      %s178 = ssub.s32 %s35, %s47
      %s179 = ssub.s32 %s36, %s43
      %s180 = sor.u32 %s178, %s179
      %p181 = scmp.eq.s32.totalorder %s180, 0
      %s183 = sadd.s32 %s182, 1
      %s184 = scalar_select %p181, %s182, %s183
      %p187 = pneg %p181
      %p188 = scmp.eq.s32.totalorder %s28, 3
      %p189 = por %p187, %p188
      %p190 = scmp.ne.s32.totalorder %s182, %s185
      %p191 = scmp.eq.s32.totalorder %s28, 0
      %p192 = por %p190, %p191
      %p193 = scmp.ne.s32.totalorder %s182, %s185
      %p194 = scmp.eq.s32.totalorder %s33, 3
      %p195 = por %p193, %p194
      %p196 = scmp.ne.s32.totalorder %s185, %s186
      %p197 = scmp.eq.s32.totalorder %s33, 0
      %p198 = por %p196, %p197
      %p199 = scmp.ne.s32.totalorder %s185, %s186
      %p200 = scmp.eq.s32.totalorder %s34, 3
      %p201 = por %p199, %p200
      %p203 = scmp.ne.s32.totalorder %s186, %s202
      %p204 = scmp.eq.s32.totalorder %s34, 0
      %p205 = por %p203, %p204
      %s206 = ssub.s32 %s35, %s47
      %p207 = scmp.eq.s32.totalorder %s206, 0
      %s209 = sadd.s32 %s208, 1
      %s210 = scalar_select %p207, %s208, %s209
      %p213 = pneg %p207
      %p214 = scmp.eq.s32.totalorder %s28, 3
      %p215 = por %p213, %p214
      %p216 = scmp.ne.s32.totalorder %s208, %s211
      %p217 = scmp.eq.s32.totalorder %s28, 0
      %p218 = por %p216, %p217
      %p219 = scmp.ne.s32.totalorder %s208, %s211
      %p220 = scmp.eq.s32.totalorder %s33, 3
      %p221 = por %p219, %p220
      %p222 = scmp.ne.s32.totalorder %s211, %s212
      %p223 = scmp.eq.s32.totalorder %s33, 0
      %p224 = por %p222, %p223
      %p225 = scmp.ne.s32.totalorder %s211, %s212
      %p226 = scmp.eq.s32.totalorder %s34, 3
      %p227 = por %p225, %p226
      %p229 = scmp.ne.s32.totalorder %s212, %s228
      %p230 = scmp.eq.s32.totalorder %s34, 0
      %p231 = por %p229, %p230
      %p232 = scmp.le.s32.totalorder 1, %s28
      %p233 = scmp.lt.s32.totalorder %s28, 5
      %p234 = pnand %p232, %p233
      %p235 = pneg %p234
      // Predicated region
      $region9: #{tpu_custom_call.1} parent=5 // pred_check
        _
      $region10: #{tpu_custom_call.1} parent=5 // pred_check_branch
        %237 = sbr.rel (%p234) target = $region12
      $region11: #{tpu_custom_call.1} parent=5 // pred_region
        %s238 = ssub.s32 %s28, 1
      $region12: #{tpu_custom_call.1} parent=5 // pred_fallthru
        _
      %p239 = scmp.lt.s32.totalorder %s28, 4
      // Predicated region
      $region13: #{tpu_custom_call.1} parent=5 // pred_check
        %p240 = pneg %p239
      $region14: #{tpu_custom_call.1} parent=5 // pred_check_branch
        %242 = sbr.rel (%p240) target = $region16
      $region15: #{tpu_custom_call.1} parent=5 // pred_region
        // Predicated region
        $region17: #{tpu_custom_call.1} parent=15 // pred_check
          %p243 = pneg %p60
        $region18: #{tpu_custom_call.1} parent=15 // pred_check_branch
          %245 = sbr.rel (%p243) target = $region20
        $region19: #{tpu_custom_call.1} parent=15 // pred_region
          %s246 = sand.u32 %s50, 1
          %s247 = scalar_lea.sflag [#allocation8], %s246
          %s248 = sand.u32 %s50, 1
          %s249 = smul.addr %s248, 12
          %s250 = scalar_lea.vmem [#allocation7], %s249
          %s252 = ssub.s32 192, 192
          %253 = vsyncadd %s247, %s252
          %s254 = smul.addr %s35, 64
          %s255 = scalar_lea.hbm %s0, %s254
          %s256 = sshll.u32 %s250, 4
          %s257 = int_to_ptr.vmem [resolvable:$true] %s256
          %262 = dma.hbm_to_vmem [thread:$0]  %s255, 192, %s257, %s247, 128, 64, 4
        $region20: #{tpu_custom_call.1} parent=15 // pred_fallthru
          _
        // Predicated region
        $region21: #{tpu_custom_call.1} parent=15 // pred_check
          %p263 = pneg %p86
        $region22: #{tpu_custom_call.1} parent=15 // pred_check_branch
          %265 = sbr.rel (%p263) target = $region24
        $region23: #{tpu_custom_call.1} parent=15 // pred_region
          %s266 = sand.u32 %s28, 1
          %s267 = scalar_lea.sflag [#allocation11], %s266
          %s268 = sand.u32 %s76, 1
          %s269 = smul.addr %s268, 16
          %s270 = scalar_lea.vmem [#allocation10], %s269
          %s272 = ssub.s32 256, 256
          %273 = vsyncadd %s267, %s272
          %s274 = smul.addr %s36, 64
          %s275 = scalar_lea.hbm %s1, %s274
          %s276 = sshll.u32 %s270, 4
          %s277 = int_to_ptr.vmem [resolvable:$true] %s276
          %282 = dma.hbm_to_vmem [thread:$0]  %s275, 256, %s277, %s267, 128, 64, 4
        $region24: #{tpu_custom_call.1} parent=15 // pred_fallthru
          _
        // Predicated region
        $region25: #{tpu_custom_call.1} parent=15 // pred_check
          %p283 = pneg %p112
        $region26: #{tpu_custom_call.1} parent=15 // pred_check_branch
          %285 = sbr.rel (%p283) target = $region28
        $region27: #{tpu_custom_call.1} parent=15 // pred_region
          %s286 = sand.u32 %s28, 1
          %s287 = scalar_lea.sflag [#allocation11], %s286
          %s288 = sand.u32 %s102, 1
          %s289 = smul.addr %s288, 8
          %s290 = scalar_lea.vmem [#allocation12], %s289
          %s292 = ssub.s32 128, 128
          %293 = vsyncadd %s287, %s292
          %s294 = smul.addr %s35, 128
          %s295 = scalar_lea.hbm %s2, %s294
          %s297 = sshll.u32 %s290, 4
          %s298 = int_to_ptr.vmem [resolvable:$true] %s297
          %300 = dma.hbm_to_vmem [thread:$0]  %s295, 128, %s298, %s287
        $region28: #{tpu_custom_call.1} parent=15 // pred_fallthru
          _
        // Predicated region
        $region29: #{tpu_custom_call.1} parent=15 // pred_check
          %p301 = pneg %p138
        $region30: #{tpu_custom_call.1} parent=15 // pred_check_branch
          %303 = sbr.rel (%p301) target = $region32
        $region31: #{tpu_custom_call.1} parent=15 // pred_region
          %s304 = sand.u32 %s28, 1
          %s305 = scalar_lea.sflag [#allocation14], %s304
          %s306 = sand.u32 %s128, 1
          %s307 = smul.addr %s306, 8
          %s308 = scalar_lea.vmem [#allocation13], %s307
          %s310 = ssub.s32 128, 128
          %311 = vsyncadd %s305, %s310
          %s312 = smul.addr %s35, 128
          %s313 = scalar_lea.hbm %s3, %s312
          %s315 = sshll.u32 %s308, 4
          %s316 = int_to_ptr.vmem [resolvable:$true] %s315
          %318 = dma.hbm_to_vmem [thread:$0]  %s313, 128, %s316, %s305
        $region32: #{tpu_custom_call.1} parent=15 // pred_fallthru
          _
        // Predicated region
        $region33: #{tpu_custom_call.1} parent=15 // pred_check
          %p319 = pneg %p164
        $region34: #{tpu_custom_call.1} parent=15 // pred_check_branch
          %321 = sbr.rel (%p319) target = $region36
        $region35: #{tpu_custom_call.1} parent=15 // pred_region
          %s322 = sand.u32 %s28, 1
          %s323 = scalar_lea.sflag [#allocation14], %s322
          %s324 = sand.u32 %s154, 1
          %s325 = smul.addr %s324, 8
          %s326 = scalar_lea.vmem [#allocation15], %s325
          %s328 = ssub.s32 128, 128
          %329 = vsyncadd %s323, %s328
          %s330 = smul.addr %s35, 128
          %s331 = scalar_lea.hbm %s4, %s330
          %s333 = sshll.u32 %s326, 4
          %s334 = int_to_ptr.vmem [resolvable:$true] %s333
          %336 = dma.hbm_to_vmem [thread:$0]  %s331, 128, %s334, %s323
        $region36: #{tpu_custom_call.1} parent=15 // pred_fallthru
          _
      $region16: #{tpu_custom_call.1} parent=5 // pred_fallthru
        _
      %p337 = scmp.le.s32.totalorder 1, %s28
      %p338 = scmp.lt.s32.totalorder %s28, 5
      %p339 = pnand %p337, %p338
      %p340 = pneg %p339
      // Predicated region
      $region37: #{tpu_custom_call.1} parent=5 // pred_check
        _
      $region38: #{tpu_custom_call.1} parent=5 // pred_check_branch
        %342 = sbr.rel (%p339) target = $region40
      $region39: #{tpu_custom_call.1} parent=5 // pred_region
        %s343 = ssub.s32 %s28, 1
        %s344 = sand.u32 %s53, 1
        %s345 = scalar_lea.sflag [#allocation8], %s344
        %s346 = sand.u32 %s53, 1
        %s347 = smul.addr %s346, 12
        %s348 = scalar_lea.vmem [#allocation7], %s347
        // Predicated region
        $region41: #{tpu_custom_call.1} parent=39 // pred_check
          %p349 = pneg %p66
        $region42: #{tpu_custom_call.1} parent=39 // pred_check_branch
          %351 = sbr.rel (%p349) target = $region44
        $region43: #{tpu_custom_call.1} parent=39 // pred_region
          %352 = dma.done %s345, 192
        $region44: #{tpu_custom_call.1} parent=39 // pred_fallthru
          _
        %s353 = sand.u32 %s33, 1
        %s354 = scalar_lea.sflag [#allocation11], %s353
        %s355 = sand.u32 %s79, 1
        %s356 = smul.addr %s355, 16
        %s357 = scalar_lea.vmem [#allocation10], %s356
        // Predicated region
        $region45: #{tpu_custom_call.1} parent=39 // pred_check
          %p358 = pneg %p92
        $region46: #{tpu_custom_call.1} parent=39 // pred_check_branch
          %360 = sbr.rel (%p358) target = $region48
        $region47: #{tpu_custom_call.1} parent=39 // pred_region
          %361 = dma.done %s354, 256
        $region48: #{tpu_custom_call.1} parent=39 // pred_fallthru
          _
        %s362 = sand.u32 %s33, 1
        %s363 = scalar_lea.sflag [#allocation11], %s362
        %s364 = sand.u32 %s105, 1
        %s365 = smul.addr %s364, 8
        %s366 = scalar_lea.vmem [#allocation12], %s365
        // Predicated region
        $region49: #{tpu_custom_call.1} parent=39 // pred_check
          %p367 = pneg %p118
        $region50: #{tpu_custom_call.1} parent=39 // pred_check_branch
          %369 = sbr.rel (%p367) target = $region52
        $region51: #{tpu_custom_call.1} parent=39 // pred_region
          %370 = dma.done %s363, 128
        $region52: #{tpu_custom_call.1} parent=39 // pred_fallthru
          _
        %s371 = sand.u32 %s33, 1
        %s372 = scalar_lea.sflag [#allocation14], %s371
        %s373 = sand.u32 %s131, 1
        %s374 = smul.addr %s373, 8
        %s375 = scalar_lea.vmem [#allocation13], %s374
        // Predicated region
        $region53: #{tpu_custom_call.1} parent=39 // pred_check
          %p376 = pneg %p144
        $region54: #{tpu_custom_call.1} parent=39 // pred_check_branch
          %378 = sbr.rel (%p376) target = $region56
        $region55: #{tpu_custom_call.1} parent=39 // pred_region
          %379 = dma.done %s372, 128
        $region56: #{tpu_custom_call.1} parent=39 // pred_fallthru
          _
        %s380 = sand.u32 %s33, 1
        %s381 = scalar_lea.sflag [#allocation14], %s380
        %s382 = sand.u32 %s157, 1
        %s383 = smul.addr %s382, 8
        %s384 = scalar_lea.vmem [#allocation15], %s383
        // Predicated region
        $region57: #{tpu_custom_call.1} parent=39 // pred_check
          %p385 = pneg %p170
        $region58: #{tpu_custom_call.1} parent=39 // pred_check_branch
          %387 = sbr.rel (%p385) target = $region60
        $region59: #{tpu_custom_call.1} parent=39 // pred_region
          %388 = dma.done %s381, 128
        $region60: #{tpu_custom_call.1} parent=39 // pred_fallthru
          _
        %s389 = sand.u32 %s53, 1
        %s390 = scalar_lea.sflag [#allocation8], %s389
        %s391 = sand.u32 %s53, 1
        %s392 = smul.addr %s391, 12
        %s393 = scalar_lea.vmem [#allocation7], %s392
        %p394 = pneg %p66
        %p395 = pneg %p63
        %s396 = sand.u32 %s33, 1
        %s397 = scalar_lea.sflag [#allocation11], %s396
        %s398 = sand.u32 %s79, 1
        %s399 = smul.addr %s398, 16
        %s400 = scalar_lea.vmem [#allocation10], %s399
        %p401 = pneg %p92
        %p402 = pneg %p89
        %s403 = sand.u32 %s33, 1
        %s404 = scalar_lea.sflag [#allocation11], %s403
        %s405 = sand.u32 %s105, 1
        %s406 = smul.addr %s405, 8
        %s407 = scalar_lea.vmem [#allocation12], %s406
        %p408 = pneg %p118
        %p409 = pneg %p115
        %s410 = sand.u32 %s33, 1
        %s411 = scalar_lea.sflag [#allocation14], %s410
        %s412 = sand.u32 %s131, 1
        %s413 = smul.addr %s412, 8
        %s414 = scalar_lea.vmem [#allocation13], %s413
        %p415 = pneg %p144
        %p416 = pneg %p141
        %s417 = sand.u32 %s33, 1
        %s418 = scalar_lea.sflag [#allocation14], %s417
        %s419 = sand.u32 %s157, 1
        %s420 = smul.addr %s419, 8
        %s421 = scalar_lea.vmem [#allocation15], %s420
        %p422 = pneg %p170
        %p423 = pneg %p167
        %p424 = pneg %p198
        %p425 = pneg %p195
        %s426 = sand.u32 %s185, 1
        %s427 = scalar_lea.sflag [#allocation9], %s426
        %s428 = sand.u32 %s185, 1
        %s429 = smul.addr %s428, 12
        %s430 = scalar_lea.vmem [#allocation16], %s429
        %p431 = pneg %p224
        %p432 = pneg %p221
        %s433 = sand.u32 %s211, 1
        %s434 = scalar_lea.sflag [#allocation18], %s433
        %s435 = sand.u32 %s211, 1
        %s436 = smul.addr %s435, 8
        %s437 = scalar_lea.vmem [#allocation17], %s436
        %p439 = scmp.eq.s32.totalorder %s38, 0
        // Predicated region
        $region61: #{tpu_custom_call.1} parent=39 // pred_check
          %p440 = pneg %p439
        $region62: #{tpu_custom_call.1} parent=39 // pred_check_branch
          %442 = sbr.rel (%p440) target = $region64
        $region63: #{tpu_custom_call.1} parent=39 // pred_region
          %vm443 = vcmask 23552
          %444 = vst.msk [vmem:[#allocation2] sm:$0xff] %vm443, -1e+30
          %445 = vst.msk [vmem:[#allocation3] sm:$0xff] %vm443, 0.0
          %446 = vst.msk [vmem:[#allocation4] sm:$0xff] %vm443, 0.0
          %447 = vst.msk [vmem:[#allocation5] sm:$0xff] %vm443, 0
          %448 = vst.msk [vmem:[#allocation6] sm:$0xff] %vm443, 0.0
        $region64: #{tpu_custom_call.1} parent=39 // pred_fallthru
          _
        %v449 = vld [vmem:[%s357] sm:$0xf]
        %v450 = vld [vmem:[%s357 + $0x4] sm:$0xf]
        %v451 = vld [vmem:[%s357 + $0x8] sm:$0xf]
        %v452 = vld [vmem:[%s357 + $0xc] sm:$0xf]
        %v453 = vld [vmem:[%s366] sm:$0xff]
        %v454 = vlaneseq
        %v455 = vand.u32 %v454, 127
        %s456 = smul.u32 %s38, 128
        %v457 = vstv %s456
        %v458 = vadd.s32 %v455, %v457
        %459 = vset.pattern.permute.xlu0 0
        %460 = vperm.xlu0 %459, %v453
        %v461 = vpop.permute.xlu0 %460
        %vm462 = vcmp.eq.s32.totalorder %v458, %v461
        %v463 = vsel %vm462, 1, 0
        %v464 = vcvt.s32.f32 %v463
        %v465 = vld [vmem:[%s348] sm:$0xf]
        %v470 = vunpack.c.l.b16 %v449
        %v471 = vunpack.c.l.b16 %v450
        %v472 = vunpack.c.l.b16 %v451
        %v473 = vunpack.c.l.b16 %v452
        %v474 = vpack.c.b16 %v471, %v470
        %v475 = vpack.c.b16 %v473, %v472
        %vm478 = vcmask 261120
        %v480 = vsel %vm478, %v465, 0
        %482 = vmatprep.subr.bf16.mxu0 0
        %483 = vmatpush1.bf16.msra.mxu0 %v474
        %484 = vmatprep.subr.bf16.mxu0 0
        %485 = vmatpush1.bf16.msra.mxu0 %v475
        %486 = vmatprep.subr.bf16.mxu0 0
        %487 = vmatpush1.bf16.msra.mxu0 0
        %488 = vmatprep.subr.bf16.mxu0 0
        %489 = vmatpush1.bf16.msra.mxu0 0
        %490 = vmatprep.subr.bf16.mxu0 0
        %491 = vmatpush1.bf16.msra.mxu0 0
        %492 = vmatprep.subr.bf16.mxu0 0
        %493 = vmatpush1.bf16.msra.mxu0 0
        %494 = vmatprep.subr.bf16.mxu0 0
        %495 = vmatpush1.bf16.msra.mxu0 0
        %496 = vmatprep.subr.bf16.mxu0 0
        %497 = vmatpush1.bf16.msra.mxu0 0
        %498 = vmatprep.subr.bf16.mxu0 0
        %499 = vmatpush1.bf16.msra.mxu0 0
        %500 = vmatprep.subr.bf16.mxu0 0
        %501 = vmatpush1.bf16.msra.mxu0 0
        %502 = vmatprep.subr.bf16.mxu0 0
        %503 = vmatpush1.bf16.msra.mxu0 0
        %504 = vmatprep.subr.bf16.mxu0 0
        %505 = vmatpush1.bf16.msra.mxu0 0
        %506 = vmatprep.subr.bf16.mxu0 0
        %507 = vmatpush1.bf16.msra.mxu0 0
        %508 = vmatprep.subr.bf16.mxu0 0
        %509 = vmatpush1.bf16.msra.mxu0 0
        %510 = vmatprep.subr.bf16.mxu0 0
        %511 = vmatpush1.bf16.msra.mxu0 0
        %512 = vmatprep.subr.bf16.mxu0 0
        %513 = vmatpush1.bf16.msra.mxu0 0
        %514 = vmatprep.mubr.bf16.mxu0 0
        %515 = vmatmul.mubr.bf16.gmra.mrb[0].mxu0 %v480
        %v516 = vpop.f32.mrb[0].mxu0
        %v517 = vadd.f32 0.0, %v516
        %v518 = vpop.f32.mrb[0].mxu0
        %v519 = vpop.f32.mrb[0].mxu0
        %v520 = vpop.f32.mrb[0].mxu0
        %521 = vdwg.mxu0
        %v522 = vpack.c.bf16 %v517, %v517
        %523 = vst [vmem:[%s430] sm:$0xf] %v522
        %vm524 = vcmp.lt.s32.totalorder %v458, 250
        %v525 = vsel %vm524, %v517, -1e+30
        %526 = vmax.xlane.f32.xlu0 %v525
        %v527 = vpop.xlane.xlu0 %526
        %vm528 = vcmp.eq.f32.partialorder %v525, %v527
        %v529 = vsel %vm528, %v458, 1073741824
        %v530 = vand.u32 %v529, 65535
        %v531 = vshra.s32 %v529, 16
        %v532 = vcvt.s32.f32 %v530
        %v533 = vcvt.s32.f32 %v531
        %534 = vmin.xlane.f32.xlu0 %v533
        %v535 = vpop.xlane.xlu0 %534
        %vm536 = vcmp.eq.f32.partialorder %v533, %v535
        %v537 = vsel %vm536, %v532, inf
        %538 = vmin.xlane.f32.xlu0 %v537
        %v539 = vpop.xlane.xlu0 %538
        %v540 = vcvt.f32.s32 %v539
        %v541 = vcvt.f32.s32 %v535
        %v542 = vshll.u32 %v541, 16
        %v543 = vadd.s32 %v542, %v540
        %v544 = vld [vmem:[#allocation2] sm:$0xff]
        %v545 = vmax.f32 %v544, %v527
        %v546 = vsub.f32 %v544, %v545
        %v547 = vmul.f32 %v546, 1.442695
        %v548 = vpow.pop %v547
        %550 = vset.pattern.permute.xlu0 0
        %551 = vperm.xlu0 %550, %v545
        %v552 = vpop.permute.xlu0 %551
        %v554 = vsub.f32 %v525, %v552
        %v555 = vmul.f32 %v554, 1.442695
        %v556 = vpow.pop %v555
        %v557 = vld [vmem:[#allocation3] sm:$0xff]
        %v558 = vmul.f32 %v548, %v557
        %559 = vadd.xlane.f32.xlu0 %v556
        %v560 = vpop.xlane.xlu0 %559
        %v561 = vadd.f32 %v558, %v560
        %vm562 = vcmask 7168
        %563 = vst.msk [vmem:[#allocation3] sm:$0xff] %vm562, %v561
        %v564 = vld [vmem:[#allocation4] sm:$0xff]
        %v565 = vmul.f32 %v548, %v564
        %v566 = vmul.f32 %v556, %v525
        %567 = vadd.xlane.f32.xlu0 %v566
        %v568 = vpop.xlane.xlu0 %567
        %v569 = vadd.f32 %v565, %v568
        %570 = vst.msk [vmem:[#allocation4] sm:$0xff] %vm562, %v569
        %vm571 = vcmp.gt.f32.partialorder %v527, %v544
        %v572 = vld [vmem:[#allocation5] sm:$0xff]
        %v573 = vsel %vm571, %v543, %v572
        %574 = vst.msk [vmem:[#allocation5] sm:$0xff] %vm562, %v573
        %v575 = vld [vmem:[#allocation6] sm:$0xff]
        %v576 = vmul.f32 %v525, %v464
        %577 = vadd.xlane.f32.xlu0 %v576
        %v578 = vpop.xlane.xlu0 %577
        %v579 = vadd.f32 %v575, %v578
        %580 = vst.msk [vmem:[#allocation6] sm:$0xff] %vm562, %v579
        %581 = vst.msk [vmem:[#allocation2] sm:$0xff] %vm562, %v545
        %s582 = scalar_lea.vmem %s348, 4 [#allocation7]
        %v583 = vld [vmem:[%s582] sm:$0xf]
        %v585 = vsel %vm478, %v583, 0
        %587 = vmatprep.subr.bf16.mxu0 0
        %588 = vmatpush1.bf16.msra.mxu0 %v474
        %589 = vmatprep.subr.bf16.mxu0 0
        %590 = vmatpush1.bf16.msra.mxu0 %v475
        %591 = vmatprep.subr.bf16.mxu0 0
        %592 = vmatpush1.bf16.msra.mxu0 0
        %593 = vmatprep.subr.bf16.mxu0 0
        %594 = vmatpush1.bf16.msra.mxu0 0
        %595 = vmatprep.subr.bf16.mxu0 0
        %596 = vmatpush1.bf16.msra.mxu0 0
        %597 = vmatprep.subr.bf16.mxu0 0
        %598 = vmatpush1.bf16.msra.mxu0 0
        %599 = vmatprep.subr.bf16.mxu0 0
        %600 = vmatpush1.bf16.msra.mxu0 0
        %601 = vmatprep.subr.bf16.mxu0 0
        %602 = vmatpush1.bf16.msra.mxu0 0
        %603 = vmatprep.subr.bf16.mxu0 0
        %604 = vmatpush1.bf16.msra.mxu0 0
        %605 = vmatprep.subr.bf16.mxu0 0
        %606 = vmatpush1.bf16.msra.mxu0 0
        %607 = vmatprep.subr.bf16.mxu0 0
        %608 = vmatpush1.bf16.msra.mxu0 0
        %609 = vmatprep.subr.bf16.mxu0 0
        %610 = vmatpush1.bf16.msra.mxu0 0
        %611 = vmatprep.subr.bf16.mxu0 0
        %612 = vmatpush1.bf16.msra.mxu0 0
        %613 = vmatprep.subr.bf16.mxu0 0
        %614 = vmatpush1.bf16.msra.mxu0 0
        %615 = vmatprep.subr.bf16.mxu0 0
        %616 = vmatpush1.bf16.msra.mxu0 0
        %617 = vmatprep.subr.bf16.mxu0 0
        %618 = vmatpush1.bf16.msra.mxu0 0
        %619 = vmatprep.mubr.bf16.mxu0 0
        %620 = vmatmul.mubr.bf16.gmra.mrb[0].mxu0 %v585
        %v621 = vpop.f32.mrb[0].mxu0
        %v622 = vadd.f32 0.0, %v621
        %v623 = vpop.f32.mrb[0].mxu0
        %v624 = vpop.f32.mrb[0].mxu0
        %v625 = vpop.f32.mrb[0].mxu0
        %626 = vdwg.mxu0
        %v627 = vpack.c.bf16 %v622, %v622
        %s628 = scalar_lea.vmem %s430, 4 [#allocation16]
        %629 = vst [vmem:[%s628] sm:$0xf] %v627
        %v630 = vsel %vm524, %v622, -1e+30
        %631 = vmax.xlane.f32.xlu0 %v630
        %v632 = vpop.xlane.xlu0 %631
        %vm633 = vcmp.eq.f32.partialorder %v630, %v632
        %v634 = vsel %vm633, %v458, 1073741824
        %v635 = vand.u32 %v634, 65535
        %v636 = vshra.s32 %v634, 16
        %v637 = vcvt.s32.f32 %v635
        %v638 = vcvt.s32.f32 %v636
        %639 = vmin.xlane.f32.xlu0 %v638
        %v640 = vpop.xlane.xlu0 %639
        %vm641 = vcmp.eq.f32.partialorder %v638, %v640
        %v642 = vsel %vm641, %v637, inf
        %643 = vmin.xlane.f32.xlu0 %v642
        %v644 = vpop.xlane.xlu0 %643
        %v645 = vcvt.f32.s32 %v644
        %v646 = vcvt.f32.s32 %v640
        %v647 = vshll.u32 %v646, 16
        %v648 = vadd.s32 %v647, %v645
        %v649 = vld [vmem:[#allocation2] sm:$0xff]
        %v650 = vmax.f32 %v649, %v632
        %v651 = vsub.f32 %v649, %v650
        %v652 = vmul.f32 %v651, 1.442695
        %v653 = vpow.pop %v652
        %655 = vset.pattern.permute.xlu0 1
        %656 = vperm.xlu0 %655, %v650
        %v657 = vpop.permute.xlu0 %656
        %v659 = vsub.f32 %v630, %v657
        %v660 = vmul.f32 %v659, 1.442695
        %v661 = vpow.pop %v660
        %v662 = vld [vmem:[#allocation3] sm:$0xff]
        %v663 = vmul.f32 %v653, %v662
        %664 = vadd.xlane.f32.xlu0 %v661
        %v665 = vpop.xlane.xlu0 %664
        %v666 = vadd.f32 %v663, %v665
        %vm667 = vcmask 15368
        %668 = vst.msk [vmem:[#allocation3] sm:$0xff] %vm667, %v666
        %v669 = vld [vmem:[#allocation4] sm:$0xff]
        %v670 = vmul.f32 %v653, %v669
        %v671 = vmul.f32 %v661, %v630
        %672 = vadd.xlane.f32.xlu0 %v671
        %v673 = vpop.xlane.xlu0 %672
        %v674 = vadd.f32 %v670, %v673
        %675 = vst.msk [vmem:[#allocation4] sm:$0xff] %vm667, %v674
        %vm676 = vcmp.gt.f32.partialorder %v632, %v649
        %v677 = vld [vmem:[#allocation5] sm:$0xff]
        %v678 = vsel %vm676, %v648, %v677
        %679 = vst.msk [vmem:[#allocation5] sm:$0xff] %vm667, %v678
        %v680 = vld [vmem:[#allocation6] sm:$0xff]
        %v681 = vmul.f32 %v630, %v464
        %682 = vadd.xlane.f32.xlu0 %v681
        %v683 = vpop.xlane.xlu0 %682
        %v684 = vadd.f32 %v680, %v683
        %685 = vst.msk [vmem:[#allocation6] sm:$0xff] %vm667, %v684
        %686 = vst.msk [vmem:[#allocation2] sm:$0xff] %vm667, %v650
        %s687 = scalar_lea.vmem %s348, 8 [#allocation7]
        %v688 = vld [vmem:[%s687] sm:$0xf]
        %v690 = vsel %vm478, %v688, 0
        %692 = vmatprep.subr.bf16.mxu0 0
        %693 = vmatpush1.bf16.msra.mxu0 %v474
        %694 = vmatprep.subr.bf16.mxu0 0
        %695 = vmatpush1.bf16.msra.mxu0 %v475
        %696 = vmatprep.subr.bf16.mxu0 0
        %697 = vmatpush1.bf16.msra.mxu0 0
        %698 = vmatprep.subr.bf16.mxu0 0
        %699 = vmatpush1.bf16.msra.mxu0 0
        %700 = vmatprep.subr.bf16.mxu0 0
        %701 = vmatpush1.bf16.msra.mxu0 0
        %702 = vmatprep.subr.bf16.mxu0 0
        %703 = vmatpush1.bf16.msra.mxu0 0
        %704 = vmatprep.subr.bf16.mxu0 0
        %705 = vmatpush1.bf16.msra.mxu0 0
        %706 = vmatprep.subr.bf16.mxu0 0
        %707 = vmatpush1.bf16.msra.mxu0 0
        %708 = vmatprep.subr.bf16.mxu0 0
        %709 = vmatpush1.bf16.msra.mxu0 0
        %710 = vmatprep.subr.bf16.mxu0 0
        %711 = vmatpush1.bf16.msra.mxu0 0
        %712 = vmatprep.subr.bf16.mxu0 0
        %713 = vmatpush1.bf16.msra.mxu0 0
        %714 = vmatprep.subr.bf16.mxu0 0
        %715 = vmatpush1.bf16.msra.mxu0 0
        %716 = vmatprep.subr.bf16.mxu0 0
        %717 = vmatpush1.bf16.msra.mxu0 0
        %718 = vmatprep.subr.bf16.mxu0 0
        %719 = vmatpush1.bf16.msra.mxu0 0
        %720 = vmatprep.subr.bf16.mxu0 0
        %721 = vmatpush1.bf16.msra.mxu0 0
        %722 = vmatprep.subr.bf16.mxu0 0
        %723 = vmatpush1.bf16.msra.mxu0 0
        %724 = vmatprep.mubr.bf16.mxu0 0
        %725 = vmatmul.mubr.bf16.gmra.mrb[0].mxu0 %v690
        %v726 = vpop.f32.mrb[0].mxu0
        %v727 = vadd.f32 0.0, %v726
        %v728 = vpop.f32.mrb[0].mxu0
        %v729 = vpop.f32.mrb[0].mxu0
        %v730 = vpop.f32.mrb[0].mxu0
        %731 = vdwg.mxu0
        %v732 = vpack.c.bf16 %v727, %v727
        %s733 = scalar_lea.vmem %s430, 8 [#allocation16]
        %734 = vst [vmem:[%s733] sm:$0xf] %v732
        %v735 = vsel %vm524, %v727, -1e+30
        %736 = vmax.xlane.f32.xlu0 %v735
        %v737 = vpop.xlane.xlu0 %736
        %vm738 = vcmp.eq.f32.partialorder %v735, %v737
        %v739 = vsel %vm738, %v458, 1073741824
        %v740 = vand.u32 %v739, 65535
        %v741 = vshra.s32 %v739, 16
        %v742 = vcvt.s32.f32 %v740
        %v743 = vcvt.s32.f32 %v741
        %744 = vmin.xlane.f32.xlu0 %v743
        %v745 = vpop.xlane.xlu0 %744
        %vm746 = vcmp.eq.f32.partialorder %v743, %v745
        %v747 = vsel %vm746, %v742, inf
        %748 = vmin.xlane.f32.xlu0 %v747
        %v749 = vpop.xlane.xlu0 %748
        %v750 = vcvt.f32.s32 %v749
        %v751 = vcvt.f32.s32 %v745
        %v752 = vshll.u32 %v751, 16
        %v753 = vadd.s32 %v752, %v750
        %v754 = vld [vmem:[#allocation2] sm:$0xff]
        %v755 = vmax.f32 %v754, %v737
        %v756 = vsub.f32 %v754, %v755
        %v757 = vmul.f32 %v756, 1.442695
        %v758 = vpow.pop %v757
        %760 = vset.pattern.permute.xlu0 2
        %761 = vperm.xlu0 %760, %v755
        %v762 = vpop.permute.xlu0 %761
        %v764 = vsub.f32 %v735, %v762
        %v765 = vmul.f32 %v764, 1.442695
        %v766 = vpow.pop %v765
        %v767 = vld [vmem:[#allocation3] sm:$0xff]
        %v768 = vmul.f32 %v758, %v767
        %769 = vadd.xlane.f32.xlu0 %v766
        %v770 = vpop.xlane.xlu0 %769
        %v771 = vadd.f32 %v768, %v770
        %vm772 = vcmask 23568
        %773 = vst.msk [vmem:[#allocation3] sm:$0xff] %vm772, %v771
        %v774 = vld [vmem:[#allocation4] sm:$0xff]
        %v775 = vmul.f32 %v758, %v774
        %v776 = vmul.f32 %v766, %v735
        %777 = vadd.xlane.f32.xlu0 %v776
        %v778 = vpop.xlane.xlu0 %777
        %v779 = vadd.f32 %v775, %v778
        %780 = vst.msk [vmem:[#allocation4] sm:$0xff] %vm772, %v779
        %vm781 = vcmp.gt.f32.partialorder %v737, %v754
        %v782 = vld [vmem:[#allocation5] sm:$0xff]
        %v783 = vsel %vm781, %v753, %v782
        %784 = vst.msk [vmem:[#allocation5] sm:$0xff] %vm772, %v783
        %v785 = vld [vmem:[#allocation6] sm:$0xff]
        %v786 = vmul.f32 %v735, %v464
        %787 = vadd.xlane.f32.xlu0 %v786
        %v788 = vpop.xlane.xlu0 %787
        %v789 = vadd.f32 %v785, %v788
        %790 = vst.msk [vmem:[#allocation6] sm:$0xff] %vm772, %v789
        %791 = vst.msk [vmem:[#allocation2] sm:$0xff] %vm772, %v755
        %p792 = scmp.eq.s32.totalorder %s38, 1
        // Predicated region
        $region65: #{tpu_custom_call.1} parent=39 // pred_check
          %p793 = pneg %p792
        $region66: #{tpu_custom_call.1} parent=39 // pred_check_branch
          %795 = sbr.rel (%p793) target = $region68
        $region67: #{tpu_custom_call.1} parent=39 // pred_region
          %v796 = vld [vmem:[%s375] sm:$0xff]
          %v797 = vld [vmem:[%s384] sm:$0xff]
          %v798 = vld [vmem:[#allocation2] sm:$0xff]
          %v799 = vld [vmem:[#allocation3] sm:$0xff]
          %v800 = vrcp.pop %v799
          %v801 = vmul.f32 1.0, %v800
          %v802 = vlog2.pop %v799
          %v803 = vmul.f32 %v802, 0.6931472
          %v804 = vld [vmem:[#allocation6] sm:$0xff]
          %v805 = vsub.f32 %v804, %v798
          %v806 = vmul.f32 %v805, 1.442695
          %v807 = vpow.pop %v806
          %v808 = vmul.f32 %v807, %v801
          %v809 = vsub.f32 %v805, %v803
          %v810 = vld [vmem:[#allocation4] sm:$0xff]
          %v811 = vmul.f32 %v810, %v801
          %v812 = vsub.f32 %v811, %v798
          %v813 = vsub.f32 %v812, %v803
          %v814 = vld [vmem:[#allocation5] sm:$0xff]
          %vm815 = vcmp.ne.s32.totalorder %v814, %v453
          %v816 = vsel %vm815, 1, 0
          %v817 = vcvt.s32.f32 %v816
          %v818 = vmul.f32 %v801, 1.442695
          %v819 = vpow.pop %v818
          %v820 = vmul.f32 %v819, %v817
          %v821 = vmul.f32 %v820, %v797
          %v822 = vadd.f32 %v821, 0.0
          %v823 = vmul.f32 %v808, -1.0
          %v824 = vmul.f32 %v823, 1.442695
          %v825 = vpow.pop %v824
          %v826 = vadd.f32 %v825, 0.0
          %v827 = vmul.f32 %v809, %v796
          %v828 = vsub.f32 0.0, %v827
          %v829 = vmul.f32 %v813, %v796
          %v830 = vadd.f32 %v829, 0.0
          %831 = vrot.lane.b32.xlu0 %v453, 1
          %v832 = vpop.permute.xlu0 %831
          %vm833 = vcmp.ne.s32.totalorder %v814, %v832
          %v834 = vsel %vm833, 1, 0
          %v835 = vcvt.s32.f32 %v834
          %v836 = vmul.f32 %v819, %v835
          %838 = vrot.lane.b32.xlu0 %v797, 1
          %v839 = vpop.permute.xlu0 %838
          %v841 = vmul.f32 %v836, %v839
          %843 = vrot.lane.b32.xlu0 %v841, 127
          %v844 = vpop.permute.xlu0 %843
          %v846 = vadd.f32 %v822, %v844
          %848 = vrot.lane.b32.xlu0 %v825, 127
          %v849 = vpop.permute.xlu0 %848
          %v851 = vadd.f32 %v826, %v849
          %853 = vrot.lane.b32.xlu0 %v796, 1
          %v854 = vpop.permute.xlu0 %853
          %v856 = vmul.f32 %v809, %v854
          %858 = vrot.lane.b32.xlu0 %v856, 127
          %v859 = vpop.permute.xlu0 %858
          %v861 = vsub.f32 %v828, %v859
          %v862 = vmul.f32 %v813, %v854
          %864 = vrot.lane.b32.xlu0 %v862, 127
          %v865 = vpop.permute.xlu0 %864
          %v867 = vadd.f32 %v830, %v865
          %868 = vrot.lane.b32.xlu0 %v453, 2
          %v869 = vpop.permute.xlu0 %868
          %vm870 = vcmp.ne.s32.totalorder %v814, %v869
          %v871 = vsel %vm870, 1, 0
          %v872 = vcvt.s32.f32 %v871
          %v873 = vmul.f32 %v819, %v872
          %874 = vrot.lane.b32.xlu0 %v797, 2
          %v875 = vpop.permute.xlu0 %874
          %v877 = vmul.f32 %v873, %v875
          %879 = vrot.lane.b32.xlu0 %v877, 126
          %v880 = vpop.permute.xlu0 %879
          %v882 = vadd.f32 %v846, %v880
          %883 = vrot.lane.b32.xlu0 %v825, 126
          %v884 = vpop.permute.xlu0 %883
          %v886 = vadd.f32 %v851, %v884
          %887 = vrot.lane.b32.xlu0 %v796, 2
          %v888 = vpop.permute.xlu0 %887
          %v890 = vmul.f32 %v809, %v888
          %892 = vrot.lane.b32.xlu0 %v890, 126
          %v893 = vpop.permute.xlu0 %892
          %v895 = vsub.f32 %v861, %v893
          %v896 = vmul.f32 %v813, %v888
          %898 = vrot.lane.b32.xlu0 %v896, 126
          %v899 = vpop.permute.xlu0 %898
          %v901 = vadd.f32 %v867, %v899
          %v902 = vmul.f32 %v882, 1.3498588
          %v903 = vmul.f32 %v902, %v886
          %v904 = vadd.f32 %v903, 1.0
          %v905 = vlog2.pop %v904
          %v906 = vmul.f32 %v905, 0.6931472
          %v907 = vmul.f32 %v906, %v796
          %v908 = vmul.f32 %v895, 0.33333334
          %v909 = vadd.f32 %v907, %v908
          %v910 = vsub.f32 %v909, %v901
          %911 = vst.msk [vmem:[%s437] sm:$0xff] %vm562, %v910
        $region68: #{tpu_custom_call.1} parent=39 // pred_fallthru
          _
        %s912 = sand.u32 %s185, 1
        %s913 = scalar_lea.sflag [#allocation9], %s912
        %s914 = sand.u32 %s185, 1
        %s915 = smul.addr %s914, 12
        %s916 = scalar_lea.vmem [#allocation16], %s915
        %s917 = sand.u32 %s211, 1
        %s918 = scalar_lea.sflag [#allocation18], %s917
        %s919 = sand.u32 %s211, 1
        %s920 = smul.addr %s919, 8
        %s921 = scalar_lea.vmem [#allocation17], %s920
        // Predicated region
        $region69: #{tpu_custom_call.1} parent=39 // pred_check
          %p922 = pneg %p195
        $region70: #{tpu_custom_call.1} parent=39 // pred_check_branch
          %924 = sbr.rel (%p922) target = $region72
        $region71: #{tpu_custom_call.1} parent=39 // pred_region
          %s926 = ssub.s32 192, 192
          %927 = vsyncadd %s913, %s926
          %s928 = smul.addr %s37, 2
          %s929 = sadd.s32 %s38, %s928
          %s930 = smul.addr %s929, 64
          %s931 = scalar_lea.hbm %s5, %s930
          %s932 = sshll.u32 %s916, 4
          %s933 = int_to_ptr.vmem [resolvable:$true] %s932
          %938 = dma.vmem_to_hbm [thread:$0]  %s933, 192, %s931, %s913, 64, 256, 4
        $region72: #{tpu_custom_call.1} parent=39 // pred_fallthru
          _
        // Predicated region
        $region73: #{tpu_custom_call.1} parent=39 // pred_check
          %p939 = pneg %p221
        $region74: #{tpu_custom_call.1} parent=39 // pred_check_branch
          %941 = sbr.rel (%p939) target = $region76
        $region75: #{tpu_custom_call.1} parent=39 // pred_region
          %s943 = ssub.s32 128, 128
          %944 = vsyncadd %s918, %s943
          %s945 = smul.addr %s37, 128
          %s946 = scalar_lea.hbm %s6, %s945
          %s948 = sshll.u32 %s921, 4
          %s949 = int_to_ptr.vmem [resolvable:$true] %s948
          %951 = dma.vmem_to_hbm [thread:$0]  %s949, 128, %s946, %s918
        $region76: #{tpu_custom_call.1} parent=39 // pred_fallthru
          _
      $region40: #{tpu_custom_call.1} parent=5 // pred_fallthru
        _
      %p952 = scmp.le.s32.totalorder 2, %s28
      // Predicated region
      $region77: #{tpu_custom_call.1} parent=5 // pred_check
        %p953 = pneg %p952
      $region78: #{tpu_custom_call.1} parent=5 // pred_check_branch
        %955 = sbr.rel (%p953) target = $region80
      $region79: #{tpu_custom_call.1} parent=5 // pred_region
        %s956 = ssub.s32 %s28, 2
        // Predicated region
        $region81: #{tpu_custom_call.1} parent=79 // pred_check
          %p957 = pneg %p201
        $region82: #{tpu_custom_call.1} parent=79 // pred_check_branch
          %959 = sbr.rel (%p957) target = $region84
        $region83: #{tpu_custom_call.1} parent=79 // pred_region
          %s960 = sand.u32 %s186, 1
          %s961 = scalar_lea.sflag [#allocation9], %s960
          %s962 = sand.u32 %s186, 1
          %s963 = smul.addr %s962, 12
          %s964 = scalar_lea.vmem [#allocation16], %s963
          %965 = dma.done %s961, 192
        $region84: #{tpu_custom_call.1} parent=79 // pred_fallthru
          _
        // Predicated region
        $region85: #{tpu_custom_call.1} parent=79 // pred_check
          %p966 = pneg %p227
        $region86: #{tpu_custom_call.1} parent=79 // pred_check_branch
          %968 = sbr.rel (%p966) target = $region88
        $region87: #{tpu_custom_call.1} parent=79 // pred_region
          %s969 = sand.u32 %s212, 1
          %s970 = scalar_lea.sflag [#allocation18], %s969
          %s971 = sand.u32 %s212, 1
          %s972 = smul.addr %s971, 8
          %s973 = scalar_lea.vmem [#allocation17], %s972
          %974 = dma.done %s970, 128
        $region88: #{tpu_custom_call.1} parent=79 // pred_fallthru
          _
      $region80: #{tpu_custom_call.1} parent=5 // pred_fallthru
        _
    $region6: #{tpu_custom_call.1} parent=1 // loop_footer
      %s32 = sadd.s32 1, %s28
    $region7: #{tpu_custom_call.1} parent=1 // loop_footer_branch
      %27 = sbr.rel target = $region3
    $region8: #{tpu_custom_call.1} parent=1 // loop_exit
      _
    %975 = vsyncpa [#allocation8], 1
    %s976 = scalar_lea.sflag [#allocation8], 1
    %977 = vsyncpa %s976, 1
    %978 = vsyncpa [#allocation11], 1
    %s979 = scalar_lea.sflag [#allocation11], 1
    %980 = vsyncpa %s979, 1
    %981 = vsyncpa [#allocation14], 1
    %s982 = scalar_lea.sflag [#allocation14], 1
    %983 = vsyncpa %s982, 1
    %984 = vsyncpa [#allocation9], 1
    %s985 = scalar_lea.sflag [#allocation9], 1
    %986 = vsyncpa %s985, 1
    %987 = vsyncpa [#allocation18], 1
    %s988 = scalar_lea.sflag [#allocation18], 1
    %989 = vsyncpa %s988, 1

</llo_original>
